<compile_context>
chip_gen: v7x
topology: tpu7x:2x2x1
jax: 0.10.0
libtpu: 0.0.40
codegen_flags: <defaults>
</compile_context>

<pallas_src>
import functools

import jax
import jax.numpy as jnp
from jax.experimental import pallas as pl
from jax.experimental.pallas import tpu as pltpu


# ----------------------------------------------------------------------------
# Fused Pallas kernel: LSTM layer 0 -> LSTM layer 1 -> Linear (single call)
# ----------------------------------------------------------------------------
def _fused_lstm_kernel(x_ref,      # (S*B, D)   flattened input
                       w_ih0_ref,  # (D, 4H)    layer-0 input weights (transposed)
                       w_hh0_ref,  # (H, 4H)    layer-0 recurrent weights (transposed, fused gates)
                       b0_ref,     # (1, 4H)    layer-0 combined bias (b_ih + b_hh)
                       w1_ref,     # (2H, 4H)   layer-1 [W_ih^T ; W_hh^T] K-concat
                       b1_ref,     # (1, 4H)    layer-1 combined bias
                       w_fc_ref,   # (1, H)     FC weight row (output_size == 1)
                       b_fc_ref,   # (1, 1)     FC bias
                       y_ref,      # (S*B, 1)   model output
                       *, seq_len, batch, hidden):
    S, B, H = seq_len, batch, hidden

    # Static lane masks for the fused gate activation (gate order [i, f, g, o]):
    # sigmoid(x) = 0.5*tanh(0.5*x) + 0.5 on i/f/o lanes, plain tanh on g lanes.
    lane = jax.lax.broadcasted_iota(jnp.int32, (1, 4 * H), 1)
    is_g = (lane >= 2 * H) & (lane < 3 * H)
    pre = jnp.where(is_g, 1.0, 0.5).astype(jnp.float32)        # pre-scale
    post_scale = pre                                           # same values post
    post_off = jnp.where(is_g, 0.0, 0.5).astype(jnp.float32)   # post offset

    def cell(gates, c):
        # One EUP push covers all four gate activations of this step.
        t = jnp.tanh(gates * pre)
        a = t * post_scale + post_off                          # (B, 4H) activated
        i_t = a[:, 0 * H:1 * H]
        f_t = a[:, 1 * H:2 * H]
        g_t = a[:, 2 * H:3 * H]
        o_t = a[:, 3 * H:4 * H]
        c_new = f_t * c + i_t * g_t
        h_new = o_t * jnp.tanh(c_new)                          # 2nd (and last) EUP push
        return h_new, c_new

    # Layer-0 input projection for ALL time steps at once (off the serial
    # chain), kept as one lane-dense (S*B, 4H) value — no per-gate scratch.
    xg0 = (jnp.dot(x_ref[...], w_ih0_ref[...],
                   preferred_element_type=jnp.float32) + b0_ref[...])

    w_hh0 = w_hh0_ref[...]
    w1 = w1_ref[...]
    b1 = b1_ref[...]

    h0 = jnp.zeros((B, H), jnp.float32)
    c0 = jnp.zeros((B, H), jnp.float32)
    h1 = jnp.zeros((B, H), jnp.float32)
    c1 = jnp.zeros((B, H), jnp.float32)
    h1_steps = []

    # Fully-unrolled static loop (S is small & static). Layer-0 step t+1 has no
    # data dependence on layer-1 step t, so the scheduler can wavefront-overlap
    # the two recurrence chains inside this single basic block.
    # TODO(synk): for large seq_len switch to lax.fori_loop(..., unroll=k) and
    # chunk the hoisted x @ W_ih projection over time.
    for t in range(S):
        # ---- layer 0, step t: one fused (B,H)@(H,4H) MXU dot --------------
        g0 = xg0[t * B:(t + 1) * B, :] + jnp.dot(
            h0, w_hh0, preferred_element_type=jnp.float32)
        h0, c0 = cell(g0, c0)

        # ---- layer 1, step t: input+recurrent fused via K-concatenation ---
        hcat = jnp.concatenate([h0, h1], axis=-1)              # (B, 2H)
        g1 = jnp.dot(hcat, w1, preferred_element_type=jnp.float32) + b1
        h1, c1 = cell(g1, c1)
        h1_steps.append(h1)                                    # stays vreg-resident

    # Gather layer-1 outputs (tiny, off the serial chain) and apply the FC head
    # (output_size == 1): VPU multiply + lane reduction, no N=1 MXU matmul.
    h1_all = jnp.concatenate(h1_steps, axis=0)                 # (S*B, H)
    y = jnp.sum(h1_all * w_fc_ref[...], axis=-1, keepdims=True) + b_fc_ref[...]
    y_ref[...] = y.astype(y_ref.dtype)


# ----------------------------------------------------------------------------
# Parameter preparation (done ONCE, outside the per-call path)
# ----------------------------------------------------------------------------
def prepare_params(params, hidden_size):
    """Transpose weights, fuse biases, K-concat layer-1 weights."""
    H = hidden_size
    p0, p1 = params["l0"], params["l1"]

    w_ih0 = jnp.asarray(p0["w_ih"], jnp.float32).T                       # (D, 4H)
    w_hh0 = jnp.asarray(p0["w_hh"], jnp.float32).T                       # (H, 4H)
    b0 = (jnp.asarray(p0["b_ih"], jnp.float32)
          + jnp.asarray(p0["b_hh"], jnp.float32)).reshape(1, 4 * H)      # (1, 4H)

    # Layer 1: stack [W_ih^T ; W_hh^T] along K so the per-step input+recurrent
    # projections fuse into one (B, 2H) @ (2H, 4H) MXU dot.
    w1 = jnp.concatenate([jnp.asarray(p1["w_ih"], jnp.float32).T,
                          jnp.asarray(p1["w_hh"], jnp.float32).T], axis=0)  # (2H, 4H)
    b1 = (jnp.asarray(p1["b_ih"], jnp.float32)
          + jnp.asarray(p1["b_hh"], jnp.float32)).reshape(1, 4 * H)      # (1, 4H)

    return {
        "w_ih0": w_ih0, "w_hh0": w_hh0, "b0": b0,
        "w1": w1, "b1": b1,
        "fc_w": jnp.asarray(params["fc_w"], jnp.float32),                # (1, H)
        "fc_b": jnp.asarray(params["fc_b"], jnp.float32).reshape(1, 1),  # (1, 1)
    }


# ----------------------------------------------------------------------------
# Forward wrapper: single pallas_call for the whole model
# ----------------------------------------------------------------------------
@jax.jit
def lstm_model_forward(x, prep):
    """Equivalent of LSTM.forward: 2-layer nn.LSTM followed by nn.Linear."""
    S, B, D = x.shape
    H = prep["w_hh0"].shape[0]
    O = prep["fc_w"].shape[0]
    assert O == 1  # TODO(synk): for output_size > 1 use an MXU dot for the FC head.

    x_flat = x.reshape(S * B, D)
    kernel = functools.partial(_fused_lstm_kernel, seq_len=S, batch=B, hidden=H)
    vmem = pl.BlockSpec(memory_space=pltpu.MemorySpace.VMEM)

    # TODO(synk): for large batch on v7x, add a batch-parallel grid axis with
    # dimension_semantics=(pltpu.PARALLEL,) to use the second TensorCore.
    y = pl.pallas_call(
        kernel,
        out_shape=jax.ShapeDtypeStruct((S * B, O), jnp.float32),
        in_specs=[vmem] * 8,
        out_specs=vmem,
    )(x_flat,
      prep["w_ih0"], prep["w_hh0"], prep["b0"],
      prep["w1"], prep["b1"],
      prep["fc_w"], prep["fc_b"])

    return y.reshape(S, B, O)


# ----------------------------------------------------------------------------
# Pure-JAX reference (for correctness verification only)
# ----------------------------------------------------------------------------
def _lstm_layer_ref(x, w_ih, w_hh, b_ih, b_hh):
    S, B, _ = x.shape
    H = w_hh.shape[1]

    def step(carry, x_t):
        h, c = carry
        gates = x_t @ w_ih.T + h @ w_hh.T + b_ih + b_hh
        i = jax.nn.sigmoid(gates[:, 0 * H:1 * H])
        f = jax.nn.sigmoid(gates[:, 1 * H:2 * H])
        g = jnp.tanh(gates[:, 2 * H:3 * H])
        o = jax.nn.sigmoid(gates[:, 3 * H:4 * H])
        c = f * c + i * g
        h = o * jnp.tanh(c)
        return (h, c), h

    init = (jnp.zeros((B, H), jnp.float32), jnp.zeros((B, H), jnp.float32))
    _, ys = jax.lax.scan(step, init, x)
    return ys


def _model_ref(x, params):
    h = x
    for layer in range(2):
        p = params[f"l{layer}"]
        h = _lstm_layer_ref(h, p["w_ih"], p["w_hh"], p["b_ih"], p["b_hh"])
    S, B, H = h.shape
    y = h.reshape(S * B, H) @ params["fc_w"].T + params["fc_b"]
    return y.reshape(S, B, -1)


# ----------------------------------------------------------------------------
# Main
# ----------------------------------------------------------------------------
if __name__ == "__main__":
    SEQ, BATCH, INPUT, HIDDEN, OUTPUT = 8, 2, 16, 32, 1

    key = jax.random.PRNGKey(0)
    keys = jax.random.split(key, 12)
    bound = 1.0 / (HIDDEN ** 0.5)  # PyTorch default init: U(-1/sqrt(H), 1/sqrt(H))

    def u(k, shape):
        return jax.random.uniform(k, shape, jnp.float32, -bound, bound)

    params = {
        "l0": {
            "w_ih": u(keys[0], (4 * HIDDEN, INPUT)),
            "w_hh": u(keys[1], (4 * HIDDEN, HIDDEN)),
            "b_ih": u(keys[2], (4 * HIDDEN,)),
            "b_hh": u(keys[3], (4 * HIDDEN,)),
        },
        "l1": {
            "w_ih": u(keys[4], (4 * HIDDEN, HIDDEN)),
            "w_hh": u(keys[5], (4 * HIDDEN, HIDDEN)),
            "b_ih": u(keys[6], (4 * HIDDEN,)),
            "b_hh": u(keys[7], (4 * HIDDEN,)),
        },
        "fc_w": u(keys[8], (OUTPUT, HIDDEN)),
        "fc_b": u(keys[9], (OUTPUT,)),
    }

    # Input: (seq, batch, input_size), matching PyTorch nn.LSTM (batch_first=False)
    x = jax.random.normal(keys[10], (SEQ, BATCH, INPUT), jnp.float32)

    prep = prepare_params(params, HIDDEN)  # one-time weight re-layout
    out = lstm_model_forward(x, prep)
    out = jax.block_until_ready(out)

    ref = _model_ref(x, params)
    assert out.shape == (SEQ, BATCH, OUTPUT), out.shape
    # Tolerance slightly relaxed vs 1e-5: kernel computes sigmoid via the exact
    # identity 0.5*tanh(0.5x)+0.5 (one EUP push per step); ulp-level rounding
    # differences compound mildly through the 2-layer recurrence.
    assert jnp.allclose(out, ref, atol=1e-4, rtol=1e-4), float(jnp.abs(out - ref).max())

    print("KERNEL_OK")
</pallas_src>

<mosaic_0001>
module attributes {stable_mosaic.version = 11 : i64} {
  func.func @_fused_lstm_kernel(%arg0: memref<16x16xf32, #tpu.memory_space<vmem>>, %arg1: memref<16x128xf32, #tpu.memory_space<vmem>>, %arg2: memref<32x128xf32, #tpu.memory_space<vmem>>, %arg3: memref<1x128xf32, #tpu.memory_space<vmem>>, %arg4: memref<64x128xf32, #tpu.memory_space<vmem>>, %arg5: memref<1x128xf32, #tpu.memory_space<vmem>>, %arg6: memref<1x32xf32, #tpu.memory_space<vmem>>, %arg7: memref<1x1xf32, #tpu.memory_space<vmem>>, %arg8: memref<16x1xf32, #tpu.memory_space<vmem>>) attributes {dimension_semantics = [], scalar_prefetch = 0 : i64, scratch_operands = 0 : i64, tpu.core_type = #tpu.core_type<tc>} {
    %0 = tpu.iota {dimensions = array<i32: 1>} : vector<1x128xi32>
    %c64_i32 = arith.constant 64 : i32
    %1 = vector.broadcast %c64_i32 : i32 to vector<1x128xi32>
    %2 = arith.cmpi sge, %0, %1 : vector<1x128xi32>
    %c96_i32 = arith.constant 96 : i32
    %3 = vector.broadcast %c96_i32 : i32 to vector<1x128xi32>
    %4 = arith.cmpi slt, %0, %3 : vector<1x128xi32>
    %5 = arith.andi %2, %4 : vector<1x128xi1>
    %cst = arith.constant 1.000000e+00 : f32
    %cst_0 = arith.constant 5.000000e-01 : f32
    %6 = vector.broadcast %cst : f32 to vector<1x128xf32>
    %7 = vector.broadcast %cst_0 : f32 to vector<1x128xf32>
    %8 = arith.select %5, %6, %7 : vector<1x128xi1>, vector<1x128xf32>
    %cst_1 = arith.constant 0.000000e+00 : f32
    %cst_2 = arith.constant 5.000000e-01 : f32
    %9 = vector.broadcast %cst_1 : f32 to vector<1x128xf32>
    %10 = vector.broadcast %cst_2 : f32 to vector<1x128xf32>
    %11 = arith.select %5, %9, %10 : vector<1x128xi1>, vector<1x128xf32>
    %c0 = arith.constant 0 : index
    %c0_3 = arith.constant 0 : index
    %12 = vector.load %arg0[%c0, %c0_3] : memref<16x16xf32, #tpu.memory_space<vmem>>, vector<16x16xf32>
    %c0_4 = arith.constant 0 : index
    %c0_5 = arith.constant 0 : index
    %13 = vector.load %arg1[%c0_4, %c0_5] : memref<16x128xf32, #tpu.memory_space<vmem>>, vector<16x128xf32>
    %cst_6 = arith.constant dense<0.000000e+00> : vector<16x128xf32>
    %14 = tpu.matmul %12, %13, %cst_6 {dimension_numbers = #tpu.dot_dimension_numbers<[1], [0], [0], [1], [0, 0, 1, 1], [], []>} : vector<16x16xf32>, vector<16x128xf32>, vector<16x128xf32> -> vector<16x128xf32>
    %c0_7 = arith.constant 0 : index
    %c0_8 = arith.constant 0 : index
    %15 = vector.load %arg3[%c0_7, %c0_8] : memref<1x128xf32, #tpu.memory_space<vmem>>, vector<1x128xf32>
    %16 = vector.broadcast %15 : vector<1x128xf32> to vector<16x128xf32>
    %17 = arith.addf %14, %16 : vector<16x128xf32>
    %c0_9 = arith.constant 0 : index
    %c0_10 = arith.constant 0 : index
    %18 = vector.load %arg2[%c0_9, %c0_10] : memref<32x128xf32, #tpu.memory_space<vmem>>, vector<32x128xf32>
    %c0_11 = arith.constant 0 : index
    %c0_12 = arith.constant 0 : index
    %19 = vector.load %arg4[%c0_11, %c0_12] : memref<64x128xf32, #tpu.memory_space<vmem>>, vector<64x128xf32>
    %c0_13 = arith.constant 0 : index
    %c0_14 = arith.constant 0 : index
    %20 = vector.load %arg5[%c0_13, %c0_14] : memref<1x128xf32, #tpu.memory_space<vmem>>, vector<1x128xf32>
    %cst_15 = arith.constant 0.000000e+00 : f32
    %21 = vector.broadcast %cst_15 : f32 to vector<2x32xf32>
    %cst_16 = arith.constant 0.000000e+00 : f32
    %22 = vector.broadcast %cst_16 : f32 to vector<2x32xf32>
    %cst_17 = arith.constant 0.000000e+00 : f32
    %23 = vector.broadcast %cst_17 : f32 to vector<2x32xf32>
    %cst_18 = arith.constant 0.000000e+00 : f32
    %24 = vector.broadcast %cst_18 : f32 to vector<2x32xf32>
    %25 = vector.extract_strided_slice %17 {offsets = [0, 0], sizes = [2, 128], strides = [1, 1]} : vector<16x128xf32> to vector<2x128xf32>
    %cst_19 = arith.constant dense<0.000000e+00> : vector<2x128xf32>
    %26 = tpu.matmul %21, %18, %cst_19 {dimension_numbers = #tpu.dot_dimension_numbers<[1], [0], [0], [1], [0, 0, 1, 1], [], []>} : vector<2x32xf32>, vector<32x128xf32>, vector<2x128xf32> -> vector<2x128xf32>
    %27 = arith.addf %25, %26 : vector<2x128xf32>
    %28 = vector.broadcast %8 : vector<1x128xf32> to vector<2x128xf32>
    %29 = arith.mulf %27, %28 : vector<2x128xf32>
    %30 = math.tanh %29 : vector<2x128xf32>
    %31 = vector.broadcast %8 : vector<1x128xf32> to vector<2x128xf32>
    %32 = arith.mulf %30, %31 : vector<2x128xf32>
    %33 = vector.broadcast %11 : vector<1x128xf32> to vector<2x128xf32>
    %34 = arith.addf %32, %33 : vector<2x128xf32>
    %35 = vector.extract_strided_slice %34 {offsets = [0, 0], sizes = [2, 32], strides = [1, 1]} : vector<2x128xf32> to vector<2x32xf32>
    %36 = vector.extract_strided_slice %34 {offsets = [0, 32], sizes = [2, 32], strides = [1, 1]} : vector<2x128xf32> to vector<2x32xf32>
    %37 = vector.extract_strided_slice %34 {offsets = [0, 64], sizes = [2, 32], strides = [1, 1]} : vector<2x128xf32> to vector<2x32xf32>
    %38 = vector.extract_strided_slice %34 {offsets = [0, 96], sizes = [2, 32], strides = [1, 1]} : vector<2x128xf32> to vector<2x32xf32>
    %39 = arith.mulf %36, %22 : vector<2x32xf32>
    %40 = arith.mulf %35, %37 : vector<2x32xf32>
    %41 = arith.addf %39, %40 : vector<2x32xf32>
    %42 = math.tanh %41 : vector<2x32xf32>
    %43 = arith.mulf %38, %42 : vector<2x32xf32>
    %44 = tpu.concatenate %43, %23 in 1 : vector<2x32xf32>, vector<2x32xf32> -> vector<2x64xf32>
    %cst_20 = arith.constant dense<0.000000e+00> : vector<2x128xf32>
    %45 = tpu.matmul %44, %19, %cst_20 {dimension_numbers = #tpu.dot_dimension_numbers<[1], [0], [0], [1], [0, 0, 1, 1], [], []>} : vector<2x64xf32>, vector<64x128xf32>, vector<2x128xf32> -> vector<2x128xf32>
    %46 = vector.broadcast %20 : vector<1x128xf32> to vector<2x128xf32>
    %47 = arith.addf %45, %46 : vector<2x128xf32>
    %48 = vector.broadcast %8 : vector<1x128xf32> to vector<2x128xf32>
    %49 = arith.mulf %47, %48 : vector<2x128xf32>
    %50 = math.tanh %49 : vector<2x128xf32>
    %51 = vector.broadcast %8 : vector<1x128xf32> to vector<2x128xf32>
    %52 = arith.mulf %50, %51 : vector<2x128xf32>
    %53 = vector.broadcast %11 : vector<1x128xf32> to vector<2x128xf32>
    %54 = arith.addf %52, %53 : vector<2x128xf32>
    %55 = vector.extract_strided_slice %54 {offsets = [0, 0], sizes = [2, 32], strides = [1, 1]} : vector<2x128xf32> to vector<2x32xf32>
    %56 = vector.extract_strided_slice %54 {offsets = [0, 32], sizes = [2, 32], strides = [1, 1]} : vector<2x128xf32> to vector<2x32xf32>
    %57 = vector.extract_strided_slice %54 {offsets = [0, 64], sizes = [2, 32], strides = [1, 1]} : vector<2x128xf32> to vector<2x32xf32>
    %58 = vector.extract_strided_slice %54 {offsets = [0, 96], sizes = [2, 32], strides = [1, 1]} : vector<2x128xf32> to vector<2x32xf32>
    %59 = arith.mulf %56, %24 : vector<2x32xf32>
    %60 = arith.mulf %55, %57 : vector<2x32xf32>
    %61 = arith.addf %59, %60 : vector<2x32xf32>
    %62 = math.tanh %61 : vector<2x32xf32>
    %63 = arith.mulf %58, %62 : vector<2x32xf32>
    %64 = vector.extract_strided_slice %17 {offsets = [2, 0], sizes = [2, 128], strides = [1, 1]} : vector<16x128xf32> to vector<2x128xf32>
    %cst_21 = arith.constant dense<0.000000e+00> : vector<2x128xf32>
    %65 = tpu.matmul %43, %18, %cst_21 {dimension_numbers = #tpu.dot_dimension_numbers<[1], [0], [0], [1], [0, 0, 1, 1], [], []>} : vector<2x32xf32>, vector<32x128xf32>, vector<2x128xf32> -> vector<2x128xf32>
    %66 = arith.addf %64, %65 : vector<2x128xf32>
    %67 = vector.broadcast %8 : vector<1x128xf32> to vector<2x128xf32>
    %68 = arith.mulf %66, %67 : vector<2x128xf32>
    %69 = math.tanh %68 : vector<2x128xf32>
    %70 = vector.broadcast %8 : vector<1x128xf32> to vector<2x128xf32>
    %71 = arith.mulf %69, %70 : vector<2x128xf32>
    %72 = vector.broadcast %11 : vector<1x128xf32> to vector<2x128xf32>
    %73 = arith.addf %71, %72 : vector<2x128xf32>
    %74 = vector.extract_strided_slice %73 {offsets = [0, 0], sizes = [2, 32], strides = [1, 1]} : vector<2x128xf32> to vector<2x32xf32>
    %75 = vector.extract_strided_slice %73 {offsets = [0, 32], sizes = [2, 32], strides = [1, 1]} : vector<2x128xf32> to vector<2x32xf32>
    %76 = vector.extract_strided_slice %73 {offsets = [0, 64], sizes = [2, 32], strides = [1, 1]} : vector<2x128xf32> to vector<2x32xf32>
    %77 = vector.extract_strided_slice %73 {offsets = [0, 96], sizes = [2, 32], strides = [1, 1]} : vector<2x128xf32> to vector<2x32xf32>
    %78 = arith.mulf %75, %41 : vector<2x32xf32>
    %79 = arith.mulf %74, %76 : vector<2x32xf32>
    %80 = arith.addf %78, %79 : vector<2x32xf32>
    %81 = math.tanh %80 : vector<2x32xf32>
    %82 = arith.mulf %77, %81 : vector<2x32xf32>
    %83 = tpu.concatenate %82, %63 in 1 : vector<2x32xf32>, vector<2x32xf32> -> vector<2x64xf32>
    %cst_22 = arith.constant dense<0.000000e+00> : vector<2x128xf32>
    %84 = tpu.matmul %83, %19, %cst_22 {dimension_numbers = #tpu.dot_dimension_numbers<[1], [0], [0], [1], [0, 0, 1, 1], [], []>} : vector<2x64xf32>, vector<64x128xf32>, vector<2x128xf32> -> vector<2x128xf32>
    %85 = vector.broadcast %20 : vector<1x128xf32> to vector<2x128xf32>
    %86 = arith.addf %84, %85 : vector<2x128xf32>
    %87 = vector.broadcast %8 : vector<1x128xf32> to vector<2x128xf32>
    %88 = arith.mulf %86, %87 : vector<2x128xf32>
    %89 = math.tanh %88 : vector<2x128xf32>
    %90 = vector.broadcast %8 : vector<1x128xf32> to vector<2x128xf32>
    %91 = arith.mulf %89, %90 : vector<2x128xf32>
    %92 = vector.broadcast %11 : vector<1x128xf32> to vector<2x128xf32>
    %93 = arith.addf %91, %92 : vector<2x128xf32>
    %94 = vector.extract_strided_slice %93 {offsets = [0, 0], sizes = [2, 32], strides = [1, 1]} : vector<2x128xf32> to vector<2x32xf32>
    %95 = vector.extract_strided_slice %93 {offsets = [0, 32], sizes = [2, 32], strides = [1, 1]} : vector<2x128xf32> to vector<2x32xf32>
    %96 = vector.extract_strided_slice %93 {offsets = [0, 64], sizes = [2, 32], strides = [1, 1]} : vector<2x128xf32> to vector<2x32xf32>
    %97 = vector.extract_strided_slice %93 {offsets = [0, 96], sizes = [2, 32], strides = [1, 1]} : vector<2x128xf32> to vector<2x32xf32>
    %98 = arith.mulf %95, %61 : vector<2x32xf32>
    %99 = arith.mulf %94, %96 : vector<2x32xf32>
    %100 = arith.addf %98, %99 : vector<2x32xf32>
    %101 = math.tanh %100 : vector<2x32xf32>
    %102 = arith.mulf %97, %101 : vector<2x32xf32>
    %103 = vector.extract_strided_slice %17 {offsets = [4, 0], sizes = [2, 128], strides = [1, 1]} : vector<16x128xf32> to vector<2x128xf32>
    %cst_23 = arith.constant dense<0.000000e+00> : vector<2x128xf32>
    %104 = tpu.matmul %82, %18, %cst_23 {dimension_numbers = #tpu.dot_dimension_numbers<[1], [0], [0], [1], [0, 0, 1, 1], [], []>} : vector<2x32xf32>, vector<32x128xf32>, vector<2x128xf32> -> vector<2x128xf32>
    %105 = arith.addf %103, %104 : vector<2x128xf32>
    %106 = vector.broadcast %8 : vector<1x128xf32> to vector<2x128xf32>
    %107 = arith.mulf %105, %106 : vector<2x128xf32>
    %108 = math.tanh %107 : vector<2x128xf32>
    %109 = vector.broadcast %8 : vector<1x128xf32> to vector<2x128xf32>
    %110 = arith.mulf %108, %109 : vector<2x128xf32>
    %111 = vector.broadcast %11 : vector<1x128xf32> to vector<2x128xf32>
    %112 = arith.addf %110, %111 : vector<2x128xf32>
    %113 = vector.extract_strided_slice %112 {offsets = [0, 0], sizes = [2, 32], strides = [1, 1]} : vector<2x128xf32> to vector<2x32xf32>
    %114 = vector.extract_strided_slice %112 {offsets = [0, 32], sizes = [2, 32], strides = [1, 1]} : vector<2x128xf32> to vector<2x32xf32>
    %115 = vector.extract_strided_slice %112 {offsets = [0, 64], sizes = [2, 32], strides = [1, 1]} : vector<2x128xf32> to vector<2x32xf32>
    %116 = vector.extract_strided_slice %112 {offsets = [0, 96], sizes = [2, 32], strides = [1, 1]} : vector<2x128xf32> to vector<2x32xf32>
    %117 = arith.mulf %114, %80 : vector<2x32xf32>
    %118 = arith.mulf %113, %115 : vector<2x32xf32>
    %119 = arith.addf %117, %118 : vector<2x32xf32>
    %120 = math.tanh %119 : vector<2x32xf32>
    %121 = arith.mulf %116, %120 : vector<2x32xf32>
    %122 = tpu.concatenate %121, %102 in 1 : vector<2x32xf32>, vector<2x32xf32> -> vector<2x64xf32>
    %cst_24 = arith.constant dense<0.000000e+00> : vector<2x128xf32>
    %123 = tpu.matmul %122, %19, %cst_24 {dimension_numbers = #tpu.dot_dimension_numbers<[1], [0], [0], [1], [0, 0, 1, 1], [], []>} : vector<2x64xf32>, vector<64x128xf32>, vector<2x128xf32> -> vector<2x128xf32>
    %124 = vector.broadcast %20 : vector<1x128xf32> to vector<2x128xf32>
    %125 = arith.addf %123, %124 : vector<2x128xf32>
    %126 = vector.broadcast %8 : vector<1x128xf32> to vector<2x128xf32>
    %127 = arith.mulf %125, %126 : vector<2x128xf32>
    %128 = math.tanh %127 : vector<2x128xf32>
    %129 = vector.broadcast %8 : vector<1x128xf32> to vector<2x128xf32>
    %130 = arith.mulf %128, %129 : vector<2x128xf32>
    %131 = vector.broadcast %11 : vector<1x128xf32> to vector<2x128xf32>
    %132 = arith.addf %130, %131 : vector<2x128xf32>
    %133 = vector.extract_strided_slice %132 {offsets = [0, 0], sizes = [2, 32], strides = [1, 1]} : vector<2x128xf32> to vector<2x32xf32>
    %134 = vector.extract_strided_slice %132 {offsets = [0, 32], sizes = [2, 32], strides = [1, 1]} : vector<2x128xf32> to vector<2x32xf32>
    %135 = vector.extract_strided_slice %132 {offsets = [0, 64], sizes = [2, 32], strides = [1, 1]} : vector<2x128xf32> to vector<2x32xf32>
    %136 = vector.extract_strided_slice %132 {offsets = [0, 96], sizes = [2, 32], strides = [1, 1]} : vector<2x128xf32> to vector<2x32xf32>
    %137 = arith.mulf %134, %100 : vector<2x32xf32>
    %138 = arith.mulf %133, %135 : vector<2x32xf32>
    %139 = arith.addf %137, %138 : vector<2x32xf32>
    %140 = math.tanh %139 : vector<2x32xf32>
    %141 = arith.mulf %136, %140 : vector<2x32xf32>
    %142 = vector.extract_strided_slice %17 {offsets = [6, 0], sizes = [2, 128], strides = [1, 1]} : vector<16x128xf32> to vector<2x128xf32>
    %cst_25 = arith.constant dense<0.000000e+00> : vector<2x128xf32>
    %143 = tpu.matmul %121, %18, %cst_25 {dimension_numbers = #tpu.dot_dimension_numbers<[1], [0], [0], [1], [0, 0, 1, 1], [], []>} : vector<2x32xf32>, vector<32x128xf32>, vector<2x128xf32> -> vector<2x128xf32>
    %144 = arith.addf %142, %143 : vector<2x128xf32>
    %145 = vector.broadcast %8 : vector<1x128xf32> to vector<2x128xf32>
    %146 = arith.mulf %144, %145 : vector<2x128xf32>
    %147 = math.tanh %146 : vector<2x128xf32>
    %148 = vector.broadcast %8 : vector<1x128xf32> to vector<2x128xf32>
    %149 = arith.mulf %147, %148 : vector<2x128xf32>
    %150 = vector.broadcast %11 : vector<1x128xf32> to vector<2x128xf32>
    %151 = arith.addf %149, %150 : vector<2x128xf32>
    %152 = vector.extract_strided_slice %151 {offsets = [0, 0], sizes = [2, 32], strides = [1, 1]} : vector<2x128xf32> to vector<2x32xf32>
    %153 = vector.extract_strided_slice %151 {offsets = [0, 32], sizes = [2, 32], strides = [1, 1]} : vector<2x128xf32> to vector<2x32xf32>
    %154 = vector.extract_strided_slice %151 {offsets = [0, 64], sizes = [2, 32], strides = [1, 1]} : vector<2x128xf32> to vector<2x32xf32>
    %155 = vector.extract_strided_slice %151 {offsets = [0, 96], sizes = [2, 32], strides = [1, 1]} : vector<2x128xf32> to vector<2x32xf32>
    %156 = arith.mulf %153, %119 : vector<2x32xf32>
    %157 = arith.mulf %152, %154 : vector<2x32xf32>
    %158 = arith.addf %156, %157 : vector<2x32xf32>
    %159 = math.tanh %158 : vector<2x32xf32>
    %160 = arith.mulf %155, %159 : vector<2x32xf32>
    %161 = tpu.concatenate %160, %141 in 1 : vector<2x32xf32>, vector<2x32xf32> -> vector<2x64xf32>
    %cst_26 = arith.constant dense<0.000000e+00> : vector<2x128xf32>
    %162 = tpu.matmul %161, %19, %cst_26 {dimension_numbers = #tpu.dot_dimension_numbers<[1], [0], [0], [1], [0, 0, 1, 1], [], []>} : vector<2x64xf32>, vector<64x128xf32>, vector<2x128xf32> -> vector<2x128xf32>
    %163 = vector.broadcast %20 : vector<1x128xf32> to vector<2x128xf32>
    %164 = arith.addf %162, %163 : vector<2x128xf32>
    %165 = vector.broadcast %8 : vector<1x128xf32> to vector<2x128xf32>
    %166 = arith.mulf %164, %165 : vector<2x128xf32>
    %167 = math.tanh %166 : vector<2x128xf32>
    %168 = vector.broadcast %8 : vector<1x128xf32> to vector<2x128xf32>
    %169 = arith.mulf %167, %168 : vector<2x128xf32>
    %170 = vector.broadcast %11 : vector<1x128xf32> to vector<2x128xf32>
    %171 = arith.addf %169, %170 : vector<2x128xf32>
    %172 = vector.extract_strided_slice %171 {offsets = [0, 0], sizes = [2, 32], strides = [1, 1]} : vector<2x128xf32> to vector<2x32xf32>
    %173 = vector.extract_strided_slice %171 {offsets = [0, 32], sizes = [2, 32], strides = [1, 1]} : vector<2x128xf32> to vector<2x32xf32>
    %174 = vector.extract_strided_slice %171 {offsets = [0, 64], sizes = [2, 32], strides = [1, 1]} : vector<2x128xf32> to vector<2x32xf32>
    %175 = vector.extract_strided_slice %171 {offsets = [0, 96], sizes = [2, 32], strides = [1, 1]} : vector<2x128xf32> to vector<2x32xf32>
    %176 = arith.mulf %173, %139 : vector<2x32xf32>
    %177 = arith.mulf %172, %174 : vector<2x32xf32>
    %178 = arith.addf %176, %177 : vector<2x32xf32>
    %179 = math.tanh %178 : vector<2x32xf32>
    %180 = arith.mulf %175, %179 : vector<2x32xf32>
    %181 = vector.extract_strided_slice %17 {offsets = [8, 0], sizes = [2, 128], strides = [1, 1]} : vector<16x128xf32> to vector<2x128xf32>
    %cst_27 = arith.constant dense<0.000000e+00> : vector<2x128xf32>
    %182 = tpu.matmul %160, %18, %cst_27 {dimension_numbers = #tpu.dot_dimension_numbers<[1], [0], [0], [1], [0, 0, 1, 1], [], []>} : vector<2x32xf32>, vector<32x128xf32>, vector<2x128xf32> -> vector<2x128xf32>
    %183 = arith.addf %181, %182 : vector<2x128xf32>
    %184 = vector.broadcast %8 : vector<1x128xf32> to vector<2x128xf32>
    %185 = arith.mulf %183, %184 : vector<2x128xf32>
    %186 = math.tanh %185 : vector<2x128xf32>
    %187 = vector.broadcast %8 : vector<1x128xf32> to vector<2x128xf32>
    %188 = arith.mulf %186, %187 : vector<2x128xf32>
    %189 = vector.broadcast %11 : vector<1x128xf32> to vector<2x128xf32>
    %190 = arith.addf %188, %189 : vector<2x128xf32>
    %191 = vector.extract_strided_slice %190 {offsets = [0, 0], sizes = [2, 32], strides = [1, 1]} : vector<2x128xf32> to vector<2x32xf32>
    %192 = vector.extract_strided_slice %190 {offsets = [0, 32], sizes = [2, 32], strides = [1, 1]} : vector<2x128xf32> to vector<2x32xf32>
    %193 = vector.extract_strided_slice %190 {offsets = [0, 64], sizes = [2, 32], strides = [1, 1]} : vector<2x128xf32> to vector<2x32xf32>
    %194 = vector.extract_strided_slice %190 {offsets = [0, 96], sizes = [2, 32], strides = [1, 1]} : vector<2x128xf32> to vector<2x32xf32>
    %195 = arith.mulf %192, %158 : vector<2x32xf32>
    %196 = arith.mulf %191, %193 : vector<2x32xf32>
    %197 = arith.addf %195, %196 : vector<2x32xf32>
    %198 = math.tanh %197 : vector<2x32xf32>
    %199 = arith.mulf %194, %198 : vector<2x32xf32>
    %200 = tpu.concatenate %199, %180 in 1 : vector<2x32xf32>, vector<2x32xf32> -> vector<2x64xf32>
    %cst_28 = arith.constant dense<0.000000e+00> : vector<2x128xf32>
    %201 = tpu.matmul %200, %19, %cst_28 {dimension_numbers = #tpu.dot_dimension_numbers<[1], [0], [0], [1], [0, 0, 1, 1], [], []>} : vector<2x64xf32>, vector<64x128xf32>, vector<2x128xf32> -> vector<2x128xf32>
    %202 = vector.broadcast %20 : vector<1x128xf32> to vector<2x128xf32>
    %203 = arith.addf %201, %202 : vector<2x128xf32>
    %204 = vector.broadcast %8 : vector<1x128xf32> to vector<2x128xf32>
    %205 = arith.mulf %203, %204 : vector<2x128xf32>
    %206 = math.tanh %205 : vector<2x128xf32>
    %207 = vector.broadcast %8 : vector<1x128xf32> to vector<2x128xf32>
    %208 = arith.mulf %206, %207 : vector<2x128xf32>
    %209 = vector.broadcast %11 : vector<1x128xf32> to vector<2x128xf32>
    %210 = arith.addf %208, %209 : vector<2x128xf32>
    %211 = vector.extract_strided_slice %210 {offsets = [0, 0], sizes = [2, 32], strides = [1, 1]} : vector<2x128xf32> to vector<2x32xf32>
    %212 = vector.extract_strided_slice %210 {offsets = [0, 32], sizes = [2, 32], strides = [1, 1]} : vector<2x128xf32> to vector<2x32xf32>
    %213 = vector.extract_strided_slice %210 {offsets = [0, 64], sizes = [2, 32], strides = [1, 1]} : vector<2x128xf32> to vector<2x32xf32>
    %214 = vector.extract_strided_slice %210 {offsets = [0, 96], sizes = [2, 32], strides = [1, 1]} : vector<2x128xf32> to vector<2x32xf32>
    %215 = arith.mulf %212, %178 : vector<2x32xf32>
    %216 = arith.mulf %211, %213 : vector<2x32xf32>
    %217 = arith.addf %215, %216 : vector<2x32xf32>
    %218 = math.tanh %217 : vector<2x32xf32>
    %219 = arith.mulf %214, %218 : vector<2x32xf32>
    %220 = vector.extract_strided_slice %17 {offsets = [10, 0], sizes = [2, 128], strides = [1, 1]} : vector<16x128xf32> to vector<2x128xf32>
    %cst_29 = arith.constant dense<0.000000e+00> : vector<2x128xf32>
    %221 = tpu.matmul %199, %18, %cst_29 {dimension_numbers = #tpu.dot_dimension_numbers<[1], [0], [0], [1], [0, 0, 1, 1], [], []>} : vector<2x32xf32>, vector<32x128xf32>, vector<2x128xf32> -> vector<2x128xf32>
    %222 = arith.addf %220, %221 : vector<2x128xf32>
    %223 = vector.broadcast %8 : vector<1x128xf32> to vector<2x128xf32>
    %224 = arith.mulf %222, %223 : vector<2x128xf32>
    %225 = math.tanh %224 : vector<2x128xf32>
    %226 = vector.broadcast %8 : vector<1x128xf32> to vector<2x128xf32>
    %227 = arith.mulf %225, %226 : vector<2x128xf32>
    %228 = vector.broadcast %11 : vector<1x128xf32> to vector<2x128xf32>
    %229 = arith.addf %227, %228 : vector<2x128xf32>
    %230 = vector.extract_strided_slice %229 {offsets = [0, 0], sizes = [2, 32], strides = [1, 1]} : vector<2x128xf32> to vector<2x32xf32>
    %231 = vector.extract_strided_slice %229 {offsets = [0, 32], sizes = [2, 32], strides = [1, 1]} : vector<2x128xf32> to vector<2x32xf32>
    %232 = vector.extract_strided_slice %229 {offsets = [0, 64], sizes = [2, 32], strides = [1, 1]} : vector<2x128xf32> to vector<2x32xf32>
    %233 = vector.extract_strided_slice %229 {offsets = [0, 96], sizes = [2, 32], strides = [1, 1]} : vector<2x128xf32> to vector<2x32xf32>
    %234 = arith.mulf %231, %197 : vector<2x32xf32>
    %235 = arith.mulf %230, %232 : vector<2x32xf32>
    %236 = arith.addf %234, %235 : vector<2x32xf32>
    %237 = math.tanh %236 : vector<2x32xf32>
    %238 = arith.mulf %233, %237 : vector<2x32xf32>
    %239 = tpu.concatenate %238, %219 in 1 : vector<2x32xf32>, vector<2x32xf32> -> vector<2x64xf32>
    %cst_30 = arith.constant dense<0.000000e+00> : vector<2x128xf32>
    %240 = tpu.matmul %239, %19, %cst_30 {dimension_numbers = #tpu.dot_dimension_numbers<[1], [0], [0], [1], [0, 0, 1, 1], [], []>} : vector<2x64xf32>, vector<64x128xf32>, vector<2x128xf32> -> vector<2x128xf32>
    %241 = vector.broadcast %20 : vector<1x128xf32> to vector<2x128xf32>
    %242 = arith.addf %240, %241 : vector<2x128xf32>
    %243 = vector.broadcast %8 : vector<1x128xf32> to vector<2x128xf32>
    %244 = arith.mulf %242, %243 : vector<2x128xf32>
    %245 = math.tanh %244 : vector<2x128xf32>
    %246 = vector.broadcast %8 : vector<1x128xf32> to vector<2x128xf32>
    %247 = arith.mulf %245, %246 : vector<2x128xf32>
    %248 = vector.broadcast %11 : vector<1x128xf32> to vector<2x128xf32>
    %249 = arith.addf %247, %248 : vector<2x128xf32>
    %250 = vector.extract_strided_slice %249 {offsets = [0, 0], sizes = [2, 32], strides = [1, 1]} : vector<2x128xf32> to vector<2x32xf32>
    %251 = vector.extract_strided_slice %249 {offsets = [0, 32], sizes = [2, 32], strides = [1, 1]} : vector<2x128xf32> to vector<2x32xf32>
    %252 = vector.extract_strided_slice %249 {offsets = [0, 64], sizes = [2, 32], strides = [1, 1]} : vector<2x128xf32> to vector<2x32xf32>
    %253 = vector.extract_strided_slice %249 {offsets = [0, 96], sizes = [2, 32], strides = [1, 1]} : vector<2x128xf32> to vector<2x32xf32>
    %254 = arith.mulf %251, %217 : vector<2x32xf32>
    %255 = arith.mulf %250, %252 : vector<2x32xf32>
    %256 = arith.addf %254, %255 : vector<2x32xf32>
    %257 = math.tanh %256 : vector<2x32xf32>
    %258 = arith.mulf %253, %257 : vector<2x32xf32>
    %259 = vector.extract_strided_slice %17 {offsets = [12, 0], sizes = [2, 128], strides = [1, 1]} : vector<16x128xf32> to vector<2x128xf32>
    %cst_31 = arith.constant dense<0.000000e+00> : vector<2x128xf32>
    %260 = tpu.matmul %238, %18, %cst_31 {dimension_numbers = #tpu.dot_dimension_numbers<[1], [0], [0], [1], [0, 0, 1, 1], [], []>} : vector<2x32xf32>, vector<32x128xf32>, vector<2x128xf32> -> vector<2x128xf32>
    %261 = arith.addf %259, %260 : vector<2x128xf32>
    %262 = vector.broadcast %8 : vector<1x128xf32> to vector<2x128xf32>
    %263 = arith.mulf %261, %262 : vector<2x128xf32>
    %264 = math.tanh %263 : vector<2x128xf32>
    %265 = vector.broadcast %8 : vector<1x128xf32> to vector<2x128xf32>
    %266 = arith.mulf %264, %265 : vector<2x128xf32>
    %267 = vector.broadcast %11 : vector<1x128xf32> to vector<2x128xf32>
    %268 = arith.addf %266, %267 : vector<2x128xf32>
    %269 = vector.extract_strided_slice %268 {offsets = [0, 0], sizes = [2, 32], strides = [1, 1]} : vector<2x128xf32> to vector<2x32xf32>
    %270 = vector.extract_strided_slice %268 {offsets = [0, 32], sizes = [2, 32], strides = [1, 1]} : vector<2x128xf32> to vector<2x32xf32>
    %271 = vector.extract_strided_slice %268 {offsets = [0, 64], sizes = [2, 32], strides = [1, 1]} : vector<2x128xf32> to vector<2x32xf32>
    %272 = vector.extract_strided_slice %268 {offsets = [0, 96], sizes = [2, 32], strides = [1, 1]} : vector<2x128xf32> to vector<2x32xf32>
    %273 = arith.mulf %270, %236 : vector<2x32xf32>
    %274 = arith.mulf %269, %271 : vector<2x32xf32>
    %275 = arith.addf %273, %274 : vector<2x32xf32>
    %276 = math.tanh %275 : vector<2x32xf32>
    %277 = arith.mulf %272, %276 : vector<2x32xf32>
    %278 = tpu.concatenate %277, %258 in 1 : vector<2x32xf32>, vector<2x32xf32> -> vector<2x64xf32>
    %cst_32 = arith.constant dense<0.000000e+00> : vector<2x128xf32>
    %279 = tpu.matmul %278, %19, %cst_32 {dimension_numbers = #tpu.dot_dimension_numbers<[1], [0], [0], [1], [0, 0, 1, 1], [], []>} : vector<2x64xf32>, vector<64x128xf32>, vector<2x128xf32> -> vector<2x128xf32>
    %280 = vector.broadcast %20 : vector<1x128xf32> to vector<2x128xf32>
    %281 = arith.addf %279, %280 : vector<2x128xf32>
    %282 = vector.broadcast %8 : vector<1x128xf32> to vector<2x128xf32>
    %283 = arith.mulf %281, %282 : vector<2x128xf32>
    %284 = math.tanh %283 : vector<2x128xf32>
    %285 = vector.broadcast %8 : vector<1x128xf32> to vector<2x128xf32>
    %286 = arith.mulf %284, %285 : vector<2x128xf32>
    %287 = vector.broadcast %11 : vector<1x128xf32> to vector<2x128xf32>
    %288 = arith.addf %286, %287 : vector<2x128xf32>
    %289 = vector.extract_strided_slice %288 {offsets = [0, 0], sizes = [2, 32], strides = [1, 1]} : vector<2x128xf32> to vector<2x32xf32>
    %290 = vector.extract_strided_slice %288 {offsets = [0, 32], sizes = [2, 32], strides = [1, 1]} : vector<2x128xf32> to vector<2x32xf32>
    %291 = vector.extract_strided_slice %288 {offsets = [0, 64], sizes = [2, 32], strides = [1, 1]} : vector<2x128xf32> to vector<2x32xf32>
    %292 = vector.extract_strided_slice %288 {offsets = [0, 96], sizes = [2, 32], strides = [1, 1]} : vector<2x128xf32> to vector<2x32xf32>
    %293 = arith.mulf %290, %256 : vector<2x32xf32>
    %294 = arith.mulf %289, %291 : vector<2x32xf32>
    %295 = arith.addf %293, %294 : vector<2x32xf32>
    %296 = math.tanh %295 : vector<2x32xf32>
    %297 = arith.mulf %292, %296 : vector<2x32xf32>
    %298 = vector.extract_strided_slice %17 {offsets = [14, 0], sizes = [2, 128], strides = [1, 1]} : vector<16x128xf32> to vector<2x128xf32>
    %cst_33 = arith.constant dense<0.000000e+00> : vector<2x128xf32>
    %299 = tpu.matmul %277, %18, %cst_33 {dimension_numbers = #tpu.dot_dimension_numbers<[1], [0], [0], [1], [0, 0, 1, 1], [], []>} : vector<2x32xf32>, vector<32x128xf32>, vector<2x128xf32> -> vector<2x128xf32>
    %300 = arith.addf %298, %299 : vector<2x128xf32>
    %301 = vector.broadcast %8 : vector<1x128xf32> to vector<2x128xf32>
    %302 = arith.mulf %300, %301 : vector<2x128xf32>
    %303 = math.tanh %302 : vector<2x128xf32>
    %304 = vector.broadcast %8 : vector<1x128xf32> to vector<2x128xf32>
    %305 = arith.mulf %303, %304 : vector<2x128xf32>
    %306 = vector.broadcast %11 : vector<1x128xf32> to vector<2x128xf32>
    %307 = arith.addf %305, %306 : vector<2x128xf32>
    %308 = vector.extract_strided_slice %307 {offsets = [0, 0], sizes = [2, 32], strides = [1, 1]} : vector<2x128xf32> to vector<2x32xf32>
    %309 = vector.extract_strided_slice %307 {offsets = [0, 32], sizes = [2, 32], strides = [1, 1]} : vector<2x128xf32> to vector<2x32xf32>
    %310 = vector.extract_strided_slice %307 {offsets = [0, 64], sizes = [2, 32], strides = [1, 1]} : vector<2x128xf32> to vector<2x32xf32>
    %311 = vector.extract_strided_slice %307 {offsets = [0, 96], sizes = [2, 32], strides = [1, 1]} : vector<2x128xf32> to vector<2x32xf32>
    %312 = arith.mulf %309, %275 : vector<2x32xf32>
    %313 = arith.mulf %308, %310 : vector<2x32xf32>
    %314 = arith.addf %312, %313 : vector<2x32xf32>
    %315 = math.tanh %314 : vector<2x32xf32>
    %316 = arith.mulf %311, %315 : vector<2x32xf32>
    %317 = tpu.concatenate %316, %297 in 1 : vector<2x32xf32>, vector<2x32xf32> -> vector<2x64xf32>
    %cst_34 = arith.constant dense<0.000000e+00> : vector<2x128xf32>
    %318 = tpu.matmul %317, %19, %cst_34 {dimension_numbers = #tpu.dot_dimension_numbers<[1], [0], [0], [1], [0, 0, 1, 1], [], []>} : vector<2x64xf32>, vector<64x128xf32>, vector<2x128xf32> -> vector<2x128xf32>
    %319 = vector.broadcast %20 : vector<1x128xf32> to vector<2x128xf32>
    %320 = arith.addf %318, %319 : vector<2x128xf32>
    %321 = vector.broadcast %8 : vector<1x128xf32> to vector<2x128xf32>
    %322 = arith.mulf %320, %321 : vector<2x128xf32>
    %323 = math.tanh %322 : vector<2x128xf32>
    %324 = vector.broadcast %8 : vector<1x128xf32> to vector<2x128xf32>
    %325 = arith.mulf %323, %324 : vector<2x128xf32>
    %326 = vector.broadcast %11 : vector<1x128xf32> to vector<2x128xf32>
    %327 = arith.addf %325, %326 : vector<2x128xf32>
    %328 = vector.extract_strided_slice %327 {offsets = [0, 0], sizes = [2, 32], strides = [1, 1]} : vector<2x128xf32> to vector<2x32xf32>
    %329 = vector.extract_strided_slice %327 {offsets = [0, 32], sizes = [2, 32], strides = [1, 1]} : vector<2x128xf32> to vector<2x32xf32>
    %330 = vector.extract_strided_slice %327 {offsets = [0, 64], sizes = [2, 32], strides = [1, 1]} : vector<2x128xf32> to vector<2x32xf32>
    %331 = vector.extract_strided_slice %327 {offsets = [0, 96], sizes = [2, 32], strides = [1, 1]} : vector<2x128xf32> to vector<2x32xf32>
    %332 = arith.mulf %329, %295 : vector<2x32xf32>
    %333 = arith.mulf %328, %330 : vector<2x32xf32>
    %334 = arith.addf %332, %333 : vector<2x32xf32>
    %335 = math.tanh %334 : vector<2x32xf32>
    %336 = arith.mulf %331, %335 : vector<2x32xf32>
    %337 = tpu.concatenate %63, %102, %141, %180, %219, %258, %297, %336 in 0 : vector<2x32xf32>, vector<2x32xf32>, vector<2x32xf32>, vector<2x32xf32>, vector<2x32xf32>, vector<2x32xf32>, vector<2x32xf32>, vector<2x32xf32> -> vector<16x32xf32>
    %c0_35 = arith.constant 0 : index
    %c0_36 = arith.constant 0 : index
    %338 = vector.load %arg6[%c0_35, %c0_36] : memref<1x32xf32, #tpu.memory_space<vmem>>, vector<1x32xf32>
    %339 = vector.broadcast %338 : vector<1x32xf32> to vector<16x32xf32>
    %340 = arith.mulf %337, %339 : vector<16x32xf32>
    %cst_37 = arith.constant dense<0.000000e+00> : vector<16xf32>
    %341 = vector.multi_reduction <add>, %340, %cst_37 [1] : vector<16x32xf32> to vector<16xf32>
    %342 = vector.shape_cast %341 : vector<16xf32> to vector<16x1xf32>
    %c0_38 = arith.constant 0 : index
    %c0_39 = arith.constant 0 : index
    %343 = vector.load %arg7[%c0_38, %c0_39] : memref<1x1xf32, #tpu.memory_space<vmem>>, vector<1x1xf32>
    %344 = vector.broadcast %343 : vector<1x1xf32> to vector<16x1xf32>
    %345 = arith.addf %342, %344 : vector<16x1xf32>
    %c0_40 = arith.constant 0 : index
    %c0_41 = arith.constant 0 : index
    %346 = vector.load %arg8[%c0_40, %c0_41] : memref<16x1xf32, #tpu.memory_space<vmem>>, vector<16x1xf32>
    tpu.vector_store %arg8[%c0_40, %c0_41], %345 {strides = array<i32>} : memref<16x1xf32, #tpu.memory_space<vmem>>, vector<16x1xf32>,
    return
  }
}

</mosaic_0001>

<llo_original>
// kernel: lstm_model_forward.1
$region0: #{lstm_model_forward.1}
  #allocation0 [shape = 'u32[]', space=smem, size = 0x4, offset = 0x4, fixed_abs, tag = 'smem constant byte address 0x4 - core index']
  #allocation1 [shape = 'u32[144,128]{1,0:T(1,128)}', space=vmem, size = 0x12000, scoped, tag = 'internal scratch']
  #allocation2 [shape = 'f32[1,1]{1,0:T(1,128)S(1)}', space=vmem, size = 0x200, scoped, tag = 'scoped memory for lstm_model_forward.1']
  %s0 = inlined_call_operand.hbm [shape: f32[16,16], index: 0, kind: input, shape index: {}]
  %s1 = inlined_call_operand.vmem [shape: f32[16,128], index: 1, kind: input, shape index: {}]
  %s2 = inlined_call_operand.hbm [shape: f32[32,128], index: 2, kind: input, shape index: {}]
  %s3 = inlined_call_operand.vmem [shape: f32[1,128], index: 3, kind: input, shape index: {}]
  %s4 = inlined_call_operand.hbm [shape: f32[64,128], index: 4, kind: input, shape index: {}]
  %s5 = inlined_call_operand.vmem [shape: f32[1,128], index: 5, kind: input, shape index: {}]
  %s6 = inlined_call_operand.vmem [shape: f32[1,32], index: 6, kind: input, shape index: {}]
  %s7 = inlined_call_operand.<no memory space> [shape: f32[1,1], index: 7, kind: input, shape index: {}]
  %s8 = inlined_call_operand.vmem [shape: f32[16,1], index: 8, kind: output, shape index: {}]
  %s9 = sld [smem:[#allocation0]]
  $region54: #{lstm_model_forward.1} parent=0
    _
  %s11 = ssub.s32 1, %s9
  %s12 = scalar_select 0, %s11, %s9
  %v13 = vstv %s7
  %14 = vst [vmem:[#allocation2] sm:$0x1] %v13
  $region1: #{lstm_model_forward.1} parent=0
    #allocation3 [shape = 'u8[8192]{0}', space=vmem, size = 0x2000, scoped, tag = 'input window, operand 0, single buffered']
    #allocation4 [shape = 's32[1]{0}', space=sflag, size = 0x4, scoped, tag = 'scoped memory for lstm_model_forward.1']
    #allocation5 [shape = 'u8[16384]{0}', space=vmem, size = 0x4000, scoped, tag = 'input window, operand 2, single buffered']
    #allocation6 [shape = 's32[1]{0}', space=sflag, size = 0x4, scoped, tag = 'scoped memory for lstm_model_forward.1']
    #allocation7 [shape = 'u8[32768]{0}', space=vmem, size = 0x8000, scoped, tag = 'input window, operand 4, single buffered']
    %15 = vsyncpa [#allocation4], 0
    %16 = vsyncpa [#allocation6], 0
    // Predicated region
    $region2: #{lstm_model_forward.1} parent=1 // pred_check
      _
    $region3: #{lstm_model_forward.1} parent=1 // pred_check_branch
      %18 = sbr.rel (0) target = $region5
    $region4: #{lstm_model_forward.1} parent=1 // pred_region
      %s20 = ssub.s32 256, 256
      %21 = vsyncadd [#allocation4], %s20
      %s22 = sshll.u32 [#allocation3], 4
      %s23 = int_to_ptr.vmem [resolvable:$true] %s22
      %28 = dma.hbm_to_vmem [thread:$0]  %s0, 256, %s23, [#allocation4], 128, 128, 8
    $region5: #{lstm_model_forward.1} parent=1 // pred_fallthru
      _
    // Predicated region
    $region6: #{lstm_model_forward.1} parent=1 // pred_check
      _
    $region7: #{lstm_model_forward.1} parent=1 // pred_check_branch
      %30 = sbr.rel (0) target = $region9
    $region8: #{lstm_model_forward.1} parent=1 // pred_region
      _
    $region9: #{lstm_model_forward.1} parent=1 // pred_fallthru
      _
    // Predicated region
    $region10: #{lstm_model_forward.1} parent=1 // pred_check
      _
    $region11: #{lstm_model_forward.1} parent=1 // pred_check_branch
      %32 = sbr.rel (0) target = $region13
    $region12: #{lstm_model_forward.1} parent=1 // pred_region
      %s34 = ssub.s32 512, 512
      %35 = vsyncadd [#allocation6], %s34
      %s36 = sshll.u32 [#allocation5], 4
      %s37 = int_to_ptr.vmem [resolvable:$true] %s36
      %42 = dma.hbm_to_vmem [thread:$0]  %s2, 512, %s37, [#allocation6], 128, 128, 8
    $region13: #{lstm_model_forward.1} parent=1 // pred_fallthru
      _
    // Predicated region
    $region14: #{lstm_model_forward.1} parent=1 // pred_check
      _
    $region15: #{lstm_model_forward.1} parent=1 // pred_check_branch
      %44 = sbr.rel (0) target = $region17
    $region16: #{lstm_model_forward.1} parent=1 // pred_region
      _
    $region17: #{lstm_model_forward.1} parent=1 // pred_fallthru
      _
    // Predicated region
    $region18: #{lstm_model_forward.1} parent=1 // pred_check
      _
    $region19: #{lstm_model_forward.1} parent=1 // pred_check_branch
      %46 = sbr.rel (0) target = $region21
    $region20: #{lstm_model_forward.1} parent=1 // pred_region
      %s48 = ssub.s32 1024, 1024
      %49 = vsyncadd [#allocation6], %s48
      %s50 = sshll.u32 [#allocation7], 4
      %s51 = int_to_ptr.vmem [resolvable:$true] %s50
      %56 = dma.hbm_to_vmem [thread:$0]  %s4, 1024, %s51, [#allocation6], 128, 128, 8
    $region21: #{lstm_model_forward.1} parent=1 // pred_fallthru
      _
    // Predicated region
    $region22: #{lstm_model_forward.1} parent=1 // pred_check
      _
    $region23: #{lstm_model_forward.1} parent=1 // pred_check_branch
      %58 = sbr.rel (0) target = $region25
    $region24: #{lstm_model_forward.1} parent=1 // pred_region
      _
    $region25: #{lstm_model_forward.1} parent=1 // pred_fallthru
      _
    // Predicated region
    $region26: #{lstm_model_forward.1} parent=1 // pred_check
      _
    $region27: #{lstm_model_forward.1} parent=1 // pred_check_branch
      %60 = sbr.rel (0) target = $region29
    $region28: #{lstm_model_forward.1} parent=1 // pred_region
      _
    $region29: #{lstm_model_forward.1} parent=1 // pred_fallthru
      _
    // Predicated region
    $region30: #{lstm_model_forward.1} parent=1 // pred_check
      _
    $region31: #{lstm_model_forward.1} parent=1 // pred_check_branch
      %62 = sbr.rel (0) target = $region33
    $region32: #{lstm_model_forward.1} parent=1 // pred_region
      _
    $region33: #{lstm_model_forward.1} parent=1 // pred_fallthru
      _
    // Predicated region
    $region34: #{lstm_model_forward.1} parent=1 // pred_check
      _
    $region35: #{lstm_model_forward.1} parent=1 // pred_check_branch
      %64 = sbr.rel (0) target = $region37
    $region36: #{lstm_model_forward.1} parent=1 // pred_region
      %65 = dma.done [#allocation4], 256
    $region37: #{lstm_model_forward.1} parent=1 // pred_fallthru
      _
    // Predicated region
    $region38: #{lstm_model_forward.1} parent=1 // pred_check
      _
    $region39: #{lstm_model_forward.1} parent=1 // pred_check_branch
      %67 = sbr.rel (0) target = $region41
    $region40: #{lstm_model_forward.1} parent=1 // pred_region
      %68 = dma.done [#allocation6], 512
    $region41: #{lstm_model_forward.1} parent=1 // pred_fallthru
      _
    // Predicated region
    $region42: #{lstm_model_forward.1} parent=1 // pred_check
      _
    $region43: #{lstm_model_forward.1} parent=1 // pred_check_branch
      %70 = sbr.rel (0) target = $region45
    $region44: #{lstm_model_forward.1} parent=1 // pred_region
      %71 = dma.done [#allocation6], 1024
    $region45: #{lstm_model_forward.1} parent=1 // pred_fallthru
      _
    %v72 = vlaneseq
    %v73 = vand.u32 %v72, 127
    %vm74 = vcmp.ge.s32.totalorder %v73, 64
    %vm75 = vcmp.lt.s32.totalorder %v73, 96
    %vm76 = vmand %vm74, %vm75
    %v77 = vsel %vm76, 1.0, 0.5
    %v78 = vsel %vm76, 0.0, 0.5
    %v79 = vld [vmem:[#allocation3] sm:$0xff]
    %v80 = vld [vmem:[#allocation3 + $0x8] sm:$0xff]
    %v81 = vld [vmem:[%s1] sm:$0xff]
    %v82 = vld [vmem:[%s1 + $0x8] sm:$0xff]
    %v83 = vld [vmem:[%s3] sm:$0x1]
    %v85 = vlaneseq
    %v86 = vshrl.u32 %v85, 7
    %v87 = vsub.s32 0, %v86
    %v88 = vrot.slane %v83, %v87
    %vm90 = vcmask 130048
    %v92 = vsel %vm90, %v79, 0
    %v95 = vsel %vm90, %v80, 0
    %97 = vmatprep.subr.mxu0 0.0
    %98 = vmatpush1.msra.mxu0 %v81
    %99 = vmatprep.subr.mxu0 0.0
    %100 = vmatpush1.msra.mxu0 %v82
    %101 = vmatprep.subr.mxu0 0.0
    %102 = vmatpush1.msra.mxu0 0.0
    %103 = vmatprep.subr.mxu0 0.0
    %104 = vmatpush1.msra.mxu0 0.0
    %105 = vmatprep.subr.mxu0 0.0
    %106 = vmatpush1.msra.mxu0 0.0
    %107 = vmatprep.subr.mxu0 0.0
    %108 = vmatpush1.msra.mxu0 0.0
    %109 = vmatprep.subr.mxu0 0.0
    %110 = vmatpush1.msra.mxu0 0.0
    %111 = vmatprep.subr.mxu0 0.0
    %112 = vmatpush1.msra.mxu0 0.0
    %113 = vmatprep.subr.mxu0 0.0
    %114 = vmatpush1.msra.mxu0 0.0
    %115 = vmatprep.subr.mxu0 0.0
    %116 = vmatpush1.msra.mxu0 0.0
    %117 = vmatprep.subr.mxu0 0.0
    %118 = vmatpush1.msra.mxu0 0.0
    %119 = vmatprep.subr.mxu0 0.0
    %120 = vmatpush1.msra.mxu0 0.0
    %121 = vmatprep.subr.mxu0 0.0
    %122 = vmatpush1.msra.mxu0 0.0
    %123 = vmatprep.subr.mxu0 0.0
    %124 = vmatpush1.msra.mxu0 0.0
    %125 = vmatprep.subr.mxu0 0.0
    %126 = vmatpush1.msra.mxu0 0.0
    %127 = vmatprep.subr.mxu0 0.0
    %128 = vmatpush1.msra.mxu0 0.0
    %129 = vmatprep.subr.mxu0 0.0
    %130 = vmatpush1.msra.mxu0 0.0
    %131 = vmatprep.subr.mxu0 0.0
    %132 = vmatpush1.msra.mxu0 0.0
    %133 = vmatprep.subr.mxu0 0.0
    %134 = vmatpush1.msra.mxu0 0.0
    %135 = vmatprep.subr.mxu0 0.0
    %136 = vmatpush1.msra.mxu0 0.0
    %137 = vmatprep.subr.mxu0 0.0
    %138 = vmatpush1.msra.mxu0 0.0
    %139 = vmatprep.subr.mxu0 0.0
    %140 = vmatpush1.msra.mxu0 0.0
    %141 = vmatprep.subr.mxu0 0.0
    %142 = vmatpush1.msra.mxu0 0.0
    %143 = vmatprep.subr.mxu0 0.0
    %144 = vmatpush1.msra.mxu0 0.0
    %145 = vmatprep.subr.mxu0 0.0
    %146 = vmatpush1.msra.mxu0 0.0
    %147 = vmatprep.subr.mxu0 0.0
    %148 = vmatpush1.msra.mxu0 0.0
    %149 = vmatprep.subr.mxu0 0.0
    %150 = vmatpush1.msra.mxu0 0.0
    %151 = vmatprep.subr.mxu0 0.0
    %152 = vmatpush1.msra.mxu0 0.0
    %153 = vmatprep.subr.mxu0 0.0
    %154 = vmatpush1.msra.mxu0 0.0
    %155 = vmatprep.subr.mxu0 0.0
    %156 = vmatpush1.msra.mxu0 0.0
    %157 = vmatprep.subr.mxu0 0.0
    %158 = vmatpush1.msra.mxu0 0.0
    %159 = vmatprep.subr.mxu0 0.0
    %160 = vmatpush1.msra.mxu0 0.0
    %161 = vmatprep.mubr.f32.mxu0 0.0
    %162 = vmatmul.mubr.f32.gmra.mrb[0].mxu0 %v92
    %v163 = vpop.f32.mrb[0].mxu0
    %v164 = vadd.f32 %v88, %v163
    %v165 = vpop.f32.mrb[0].mxu0
    %166 = vmatprep.mubr.f32.mxu0 0.0
    %167 = vmatmul.mubr.f32.gmra.mrb[0].mxu0 %v95
    %v168 = vpop.f32.mrb[0].mxu0
    %v169 = vadd.f32 %v88, %v168
    %v170 = vpop.f32.mrb[0].mxu0
    %171 = vdwg.mxu0
    %v172 = vld [vmem:[#allocation5] sm:$0xff]
    %v173 = vld [vmem:[#allocation5 + $0x8] sm:$0xff]
    %v174 = vld [vmem:[#allocation5 + $0x10] sm:$0xff]
    %v175 = vld [vmem:[#allocation5 + $0x18] sm:$0xff]
    %v176 = vld [vmem:[#allocation7] sm:$0xff]
    %v177 = vld [vmem:[#allocation7 + $0x8] sm:$0xff]
    %v178 = vld [vmem:[#allocation7 + $0x10] sm:$0xff]
    %v179 = vld [vmem:[#allocation7 + $0x18] sm:$0xff]
    %v180 = vld [vmem:[#allocation7 + $0x20] sm:$0xff]
    %v181 = vld [vmem:[#allocation7 + $0x28] sm:$0xff]
    %v182 = vld [vmem:[#allocation7 + $0x30] sm:$0xff]
    %v183 = vld [vmem:[#allocation7 + $0x38] sm:$0xff]
    %v184 = vld [vmem:[%s5] sm:$0x1]
    %vm185 = vcmask 261120
    %v187 = vsel %vm185, 0.0, 0
    %189 = vmatprep.subr.mxu0 0.0
    %190 = vmatpush1.msra.mxu0 %v172
    %191 = vmatprep.subr.mxu0 0.0
    %192 = vmatpush1.msra.mxu0 %v173
    %193 = vmatprep.subr.mxu0 0.0
    %194 = vmatpush1.msra.mxu0 %v174
    %195 = vmatprep.subr.mxu0 0.0
    %196 = vmatpush1.msra.mxu0 %v175
    %197 = vmatprep.subr.mxu0 0.0
    %198 = vmatpush1.msra.mxu0 0.0
    %199 = vmatprep.subr.mxu0 0.0
    %200 = vmatpush1.msra.mxu0 0.0
    %201 = vmatprep.subr.mxu0 0.0
    %202 = vmatpush1.msra.mxu0 0.0
    %203 = vmatprep.subr.mxu0 0.0
    %204 = vmatpush1.msra.mxu0 0.0
    %205 = vmatprep.subr.mxu0 0.0
    %206 = vmatpush1.msra.mxu0 0.0
    %207 = vmatprep.subr.mxu0 0.0
    %208 = vmatpush1.msra.mxu0 0.0
    %209 = vmatprep.subr.mxu0 0.0
    %210 = vmatpush1.msra.mxu0 0.0
    %211 = vmatprep.subr.mxu0 0.0
    %212 = vmatpush1.msra.mxu0 0.0
    %213 = vmatprep.subr.mxu0 0.0
    %214 = vmatpush1.msra.mxu0 0.0
    %215 = vmatprep.subr.mxu0 0.0
    %216 = vmatpush1.msra.mxu0 0.0
    %217 = vmatprep.subr.mxu0 0.0
    %218 = vmatpush1.msra.mxu0 0.0
    %219 = vmatprep.subr.mxu0 0.0
    %220 = vmatpush1.msra.mxu0 0.0
    %221 = vmatprep.subr.mxu0 0.0
    %222 = vmatpush1.msra.mxu0 0.0
    %223 = vmatprep.subr.mxu0 0.0
    %224 = vmatpush1.msra.mxu0 0.0
    %225 = vmatprep.subr.mxu0 0.0
    %226 = vmatpush1.msra.mxu0 0.0
    %227 = vmatprep.subr.mxu0 0.0
    %228 = vmatpush1.msra.mxu0 0.0
    %229 = vmatprep.subr.mxu0 0.0
    %230 = vmatpush1.msra.mxu0 0.0
    %231 = vmatprep.subr.mxu0 0.0
    %232 = vmatpush1.msra.mxu0 0.0
    %233 = vmatprep.subr.mxu0 0.0
    %234 = vmatpush1.msra.mxu0 0.0
    %235 = vmatprep.subr.mxu0 0.0
    %236 = vmatpush1.msra.mxu0 0.0
    %237 = vmatprep.subr.mxu0 0.0
    %238 = vmatpush1.msra.mxu0 0.0
    %239 = vmatprep.subr.mxu0 0.0
    %240 = vmatpush1.msra.mxu0 0.0
    %241 = vmatprep.subr.mxu0 0.0
    %242 = vmatpush1.msra.mxu0 0.0
    %243 = vmatprep.subr.mxu0 0.0
    %244 = vmatpush1.msra.mxu0 0.0
    %245 = vmatprep.subr.mxu0 0.0
    %246 = vmatpush1.msra.mxu0 0.0
    %247 = vmatprep.subr.mxu0 0.0
    %248 = vmatpush1.msra.mxu0 0.0
    %249 = vmatprep.subr.mxu0 0.0
    %250 = vmatpush1.msra.mxu0 0.0
    %251 = vmatprep.subr.mxu0 0.0
    %252 = vmatpush1.msra.mxu0 0.0
    %253 = vmatprep.mubr.f32.mxu0 0.0
    %254 = vmatmul.mubr.f32.gmra.mrb[0].mxu0 %v187
    %v255 = vpop.f32.mrb[0].mxu0
    %v256 = vadd.f32 0.0, %v255
    %v257 = vpop.f32.mrb[0].mxu0
    %258 = vdwg.mxu0
    %v259 = vadd.f32 %v164, %v256
    %v260 = vmul.f32 %v259, %v77
    %v261 = vtanh.pop %v260
    %v262 = vmul.f32 %v261, %v77
    %v263 = vadd.f32 %v262, %v78
    %v264 = vmul.f32 %v263, 0.0
    %266 = vrot.lane.b32.xlu0 %v263, 64
    %v267 = vpop.permute.xlu0 %266
    %v269 = vmul.f32 %v263, %v267
    %271 = vrot.lane.b32.xlu0 %v269, 32
    %v272 = vpop.permute.xlu0 %271
    %v274 = vadd.f32 %v264, %v272
    %v275 = vtanh.pop %v274
    %277 = vrot.lane.b32.xlu0 %v275, 64
    %v278 = vpop.permute.xlu0 %277
    %v280 = vmul.f32 %v263, %v278
    %282 = vrot.lane.b32.xlu0 %v280, 32
    %v283 = vpop.permute.xlu0 %282
    %v285 = vsel %vm185, %v283, 0.0
    %v287 = vlaneseq
    %v288 = vshrl.u32 %v287, 7
    %v289 = vsub.s32 0, %v288
    %v290 = vrot.slane %v184, %v289
    %vm292 = vcmask 523264
    %v294 = vsel %vm292, %v285, 0
    %296 = vmatprep.subr.mxu0 0.0
    %297 = vmatpush1.msra.mxu0 %v176
    %298 = vmatprep.subr.mxu0 0.0
    %299 = vmatpush1.msra.mxu0 %v177
    %300 = vmatprep.subr.mxu0 0.0
    %301 = vmatpush1.msra.mxu0 %v178
    %302 = vmatprep.subr.mxu0 0.0
    %303 = vmatpush1.msra.mxu0 %v179
    %304 = vmatprep.subr.mxu0 0.0
    %305 = vmatpush1.msra.mxu0 %v180
    %306 = vmatprep.subr.mxu0 0.0
    %307 = vmatpush1.msra.mxu0 %v181
    %308 = vmatprep.subr.mxu0 0.0
    %309 = vmatpush1.msra.mxu0 %v182
    %310 = vmatprep.subr.mxu0 0.0
    %311 = vmatpush1.msra.mxu0 %v183
    %312 = vmatprep.subr.mxu0 0.0
    %313 = vmatpush1.msra.mxu0 0.0
    %314 = vmatprep.subr.mxu0 0.0
    %315 = vmatpush1.msra.mxu0 0.0
    %316 = vmatprep.subr.mxu0 0.0
    %317 = vmatpush1.msra.mxu0 0.0
    %318 = vmatprep.subr.mxu0 0.0
    %319 = vmatpush1.msra.mxu0 0.0
    %320 = vmatprep.subr.mxu0 0.0
    %321 = vmatpush1.msra.mxu0 0.0
    %322 = vmatprep.subr.mxu0 0.0
    %323 = vmatpush1.msra.mxu0 0.0
    %324 = vmatprep.subr.mxu0 0.0
    %325 = vmatpush1.msra.mxu0 0.0
    %326 = vmatprep.subr.mxu0 0.0
    %327 = vmatpush1.msra.mxu0 0.0
    %328 = vmatprep.subr.mxu0 0.0
    %329 = vmatpush1.msra.mxu0 0.0
    %330 = vmatprep.subr.mxu0 0.0
    %331 = vmatpush1.msra.mxu0 0.0
    %332 = vmatprep.subr.mxu0 0.0
    %333 = vmatpush1.msra.mxu0 0.0
    %334 = vmatprep.subr.mxu0 0.0
    %335 = vmatpush1.msra.mxu0 0.0
    %336 = vmatprep.subr.mxu0 0.0
    %337 = vmatpush1.msra.mxu0 0.0
    %338 = vmatprep.subr.mxu0 0.0
    %339 = vmatpush1.msra.mxu0 0.0
    %340 = vmatprep.subr.mxu0 0.0
    %341 = vmatpush1.msra.mxu0 0.0
    %342 = vmatprep.subr.mxu0 0.0
    %343 = vmatpush1.msra.mxu0 0.0
    %344 = vmatprep.subr.mxu0 0.0
    %345 = vmatpush1.msra.mxu0 0.0
    %346 = vmatprep.subr.mxu0 0.0
    %347 = vmatpush1.msra.mxu0 0.0
    %348 = vmatprep.subr.mxu0 0.0
    %349 = vmatpush1.msra.mxu0 0.0
    %350 = vmatprep.subr.mxu0 0.0
    %351 = vmatpush1.msra.mxu0 0.0
    %352 = vmatprep.subr.mxu0 0.0
    %353 = vmatpush1.msra.mxu0 0.0
    %354 = vmatprep.subr.mxu0 0.0
    %355 = vmatpush1.msra.mxu0 0.0
    %356 = vmatprep.subr.mxu0 0.0
    %357 = vmatpush1.msra.mxu0 0.0
    %358 = vmatprep.subr.mxu0 0.0
    %359 = vmatpush1.msra.mxu0 0.0
    %360 = vmatprep.mubr.f32.mxu0 0.0
    %361 = vmatmul.mubr.f32.gmra.mrb[0].mxu0 %v294
    %v362 = vpop.f32.mrb[0].mxu0
    %v363 = vadd.f32 %v290, %v362
    %v364 = vpop.f32.mrb[0].mxu0
    %365 = vdwg.mxu0
    %v366 = vmul.f32 %v363, %v77
    %v367 = vtanh.pop %v366
    %v368 = vmul.f32 %v367, %v77
    %v369 = vadd.f32 %v368, %v78
    %v370 = vmul.f32 %v369, 0.0
    %372 = vrot.lane.b32.xlu0 %v369, 64
    %v373 = vpop.permute.xlu0 %372
    %v375 = vmul.f32 %v369, %v373
    %377 = vrot.lane.b32.xlu0 %v375, 32
    %v378 = vpop.permute.xlu0 %377
    %v380 = vadd.f32 %v370, %v378
    %v381 = vtanh.pop %v380
    %383 = vrot.lane.b32.xlu0 %v381, 64
    %v384 = vpop.permute.xlu0 %383
    %v386 = vmul.f32 %v369, %v384
    %v387 = vsel %vm185, %v283, 0
    %389 = vmatprep.subr.mxu0 0.0
    %390 = vmatpush1.msra.mxu0 %v172
    %391 = vmatprep.subr.mxu0 0.0
    %392 = vmatpush1.msra.mxu0 %v173
    %393 = vmatprep.subr.mxu0 0.0
    %394 = vmatpush1.msra.mxu0 %v174
    %395 = vmatprep.subr.mxu0 0.0
    %396 = vmatpush1.msra.mxu0 %v175
    %397 = vmatprep.subr.mxu0 0.0
    %398 = vmatpush1.msra.mxu0 0.0
    %399 = vmatprep.subr.mxu0 0.0
    %400 = vmatpush1.msra.mxu0 0.0
    %401 = vmatprep.subr.mxu0 0.0
    %402 = vmatpush1.msra.mxu0 0.0
    %403 = vmatprep.subr.mxu0 0.0
    %404 = vmatpush1.msra.mxu0 0.0
    %405 = vmatprep.subr.mxu0 0.0
    %406 = vmatpush1.msra.mxu0 0.0
    %407 = vmatprep.subr.mxu0 0.0
    %408 = vmatpush1.msra.mxu0 0.0
    %409 = vmatprep.subr.mxu0 0.0
    %410 = vmatpush1.msra.mxu0 0.0
    %411 = vmatprep.subr.mxu0 0.0
    %412 = vmatpush1.msra.mxu0 0.0
    %413 = vmatprep.subr.mxu0 0.0
    %414 = vmatpush1.msra.mxu0 0.0
    %415 = vmatprep.subr.mxu0 0.0
    %416 = vmatpush1.msra.mxu0 0.0
    %417 = vmatprep.subr.mxu0 0.0
    %418 = vmatpush1.msra.mxu0 0.0
    %419 = vmatprep.subr.mxu0 0.0
    %420 = vmatpush1.msra.mxu0 0.0
    %421 = vmatprep.subr.mxu0 0.0
    %422 = vmatpush1.msra.mxu0 0.0
    %423 = vmatprep.subr.mxu0 0.0
    %424 = vmatpush1.msra.mxu0 0.0
    %425 = vmatprep.subr.mxu0 0.0
    %426 = vmatpush1.msra.mxu0 0.0
    %427 = vmatprep.subr.mxu0 0.0
    %428 = vmatpush1.msra.mxu0 0.0
    %429 = vmatprep.subr.mxu0 0.0
    %430 = vmatpush1.msra.mxu0 0.0
    %431 = vmatprep.subr.mxu0 0.0
    %432 = vmatpush1.msra.mxu0 0.0
    %433 = vmatprep.subr.mxu0 0.0
    %434 = vmatpush1.msra.mxu0 0.0
    %435 = vmatprep.subr.mxu0 0.0
    %436 = vmatpush1.msra.mxu0 0.0
    %437 = vmatprep.subr.mxu0 0.0
    %438 = vmatpush1.msra.mxu0 0.0
    %439 = vmatprep.subr.mxu0 0.0
    %440 = vmatpush1.msra.mxu0 0.0
    %441 = vmatprep.subr.mxu0 0.0
    %442 = vmatpush1.msra.mxu0 0.0
    %443 = vmatprep.subr.mxu0 0.0
    %444 = vmatpush1.msra.mxu0 0.0
    %445 = vmatprep.subr.mxu0 0.0
    %446 = vmatpush1.msra.mxu0 0.0
    %447 = vmatprep.subr.mxu0 0.0
    %448 = vmatpush1.msra.mxu0 0.0
    %449 = vmatprep.subr.mxu0 0.0
    %450 = vmatpush1.msra.mxu0 0.0
    %451 = vmatprep.subr.mxu0 0.0
    %452 = vmatpush1.msra.mxu0 0.0
    %453 = vmatprep.mubr.f32.mxu0 0.0
    %454 = vmatmul.mubr.f32.gmra.mrb[0].mxu0 %v387
    %v455 = vpop.f32.mrb[0].mxu0
    %v456 = vadd.f32 0.0, %v455
    %v457 = vpop.f32.mrb[0].mxu0
    %458 = vdwg.mxu0
    %v460 = vrot.slane %v456, 6
    %v462 = vadd.f32 %v164, %v460
    %v463 = vmul.f32 %v462, %v77
    %v464 = vtanh.pop %v463
    %v465 = vmul.f32 %v464, %v77
    %v466 = vadd.f32 %v465, %v78
    %v468 = vrot.slane %v274, 6
    %v470 = vmul.f32 %v466, %v468
    %472 = vrot.lane.b32.xlu0 %v466, 64
    %v473 = vpop.permute.xlu0 %472
    %v475 = vmul.f32 %v466, %v473
    %477 = vrot.lane.b32.xlu0 %v475, 32
    %v478 = vpop.permute.xlu0 %477
    %v480 = vadd.f32 %v470, %v478
    %v481 = vtanh.pop %v480
    %483 = vrot.lane.b32.xlu0 %v481, 64
    %v484 = vpop.permute.xlu0 %483
    %v486 = vmul.f32 %v466, %v484
    %488 = vrot.lane.b32.xlu0 %v486, 32
    %v489 = vpop.permute.xlu0 %488
    %v492 = vrot.slane %v386, 6
    %493 = vrot.lane.b32.xlu0 %v492, 64
    %v494 = vpop.permute.xlu0 %493
    %v496 = vsel %vm185, %v489, %v494
    %v498 = vrot.slane %v496, 2
    %v499 = vsel %vm292, %v498, 0
    %501 = vmatprep.subr.mxu0 0.0
    %502 = vmatpush1.msra.mxu0 %v176
    %503 = vmatprep.subr.mxu0 0.0
    %504 = vmatpush1.msra.mxu0 %v177
    %505 = vmatprep.subr.mxu0 0.0
    %506 = vmatpush1.msra.mxu0 %v178
    %507 = vmatprep.subr.mxu0 0.0
    %508 = vmatpush1.msra.mxu0 %v179
    %509 = vmatprep.subr.mxu0 0.0
    %510 = vmatpush1.msra.mxu0 %v180
    %511 = vmatprep.subr.mxu0 0.0
    %512 = vmatpush1.msra.mxu0 %v181
    %513 = vmatprep.subr.mxu0 0.0
    %514 = vmatpush1.msra.mxu0 %v182
    %515 = vmatprep.subr.mxu0 0.0
    %516 = vmatpush1.msra.mxu0 %v183
    %517 = vmatprep.subr.mxu0 0.0
    %518 = vmatpush1.msra.mxu0 0.0
    %519 = vmatprep.subr.mxu0 0.0
    %520 = vmatpush1.msra.mxu0 0.0
    %521 = vmatprep.subr.mxu0 0.0
    %522 = vmatpush1.msra.mxu0 0.0
    %523 = vmatprep.subr.mxu0 0.0
    %524 = vmatpush1.msra.mxu0 0.0
    %525 = vmatprep.subr.mxu0 0.0
    %526 = vmatpush1.msra.mxu0 0.0
    %527 = vmatprep.subr.mxu0 0.0
    %528 = vmatpush1.msra.mxu0 0.0
    %529 = vmatprep.subr.mxu0 0.0
    %530 = vmatpush1.msra.mxu0 0.0
    %531 = vmatprep.subr.mxu0 0.0
    %532 = vmatpush1.msra.mxu0 0.0
    %533 = vmatprep.subr.mxu0 0.0
    %534 = vmatpush1.msra.mxu0 0.0
    %535 = vmatprep.subr.mxu0 0.0
    %536 = vmatpush1.msra.mxu0 0.0
    %537 = vmatprep.subr.mxu0 0.0
    %538 = vmatpush1.msra.mxu0 0.0
    %539 = vmatprep.subr.mxu0 0.0
    %540 = vmatpush1.msra.mxu0 0.0
    %541 = vmatprep.subr.mxu0 0.0
    %542 = vmatpush1.msra.mxu0 0.0
    %543 = vmatprep.subr.mxu0 0.0
    %544 = vmatpush1.msra.mxu0 0.0
    %545 = vmatprep.subr.mxu0 0.0
    %546 = vmatpush1.msra.mxu0 0.0
    %547 = vmatprep.subr.mxu0 0.0
    %548 = vmatpush1.msra.mxu0 0.0
    %549 = vmatprep.subr.mxu0 0.0
    %550 = vmatpush1.msra.mxu0 0.0
    %551 = vmatprep.subr.mxu0 0.0
    %552 = vmatpush1.msra.mxu0 0.0
    %553 = vmatprep.subr.mxu0 0.0
    %554 = vmatpush1.msra.mxu0 0.0
    %555 = vmatprep.subr.mxu0 0.0
    %556 = vmatpush1.msra.mxu0 0.0
    %557 = vmatprep.subr.mxu0 0.0
    %558 = vmatpush1.msra.mxu0 0.0
    %559 = vmatprep.subr.mxu0 0.0
    %560 = vmatpush1.msra.mxu0 0.0
    %561 = vmatprep.subr.mxu0 0.0
    %562 = vmatpush1.msra.mxu0 0.0
    %563 = vmatprep.subr.mxu0 0.0
    %564 = vmatpush1.msra.mxu0 0.0
    %565 = vmatprep.mubr.f32.mxu0 0.0
    %566 = vmatmul.mubr.f32.gmra.mrb[0].mxu0 %v499
    %v567 = vpop.f32.mrb[0].mxu0
    %v568 = vadd.f32 %v290, %v567
    %v569 = vpop.f32.mrb[0].mxu0
    %570 = vdwg.mxu0
    %v571 = vmul.f32 %v568, %v77
    %v572 = vtanh.pop %v571
    %v573 = vmul.f32 %v572, %v77
    %v574 = vadd.f32 %v573, %v78
    %v575 = vmul.f32 %v574, %v380
    %577 = vrot.lane.b32.xlu0 %v574, 64
    %v578 = vpop.permute.xlu0 %577
    %v580 = vmul.f32 %v574, %v578
    %582 = vrot.lane.b32.xlu0 %v580, 32
    %v583 = vpop.permute.xlu0 %582
    %v585 = vadd.f32 %v575, %v583
    %v586 = vtanh.pop %v585
    %588 = vrot.lane.b32.xlu0 %v586, 64
    %v589 = vpop.permute.xlu0 %588
    %v591 = vmul.f32 %v574, %v589
    %v592 = vrot.slane %v486, 2
    %593 = vrot.lane.b32.xlu0 %v592, 32
    %v594 = vpop.permute.xlu0 %593
    %v595 = vsel %vm185, %v594, 0
    %597 = vmatprep.subr.mxu0 0.0
    %598 = vmatpush1.msra.mxu0 %v172
    %599 = vmatprep.subr.mxu0 0.0
    %600 = vmatpush1.msra.mxu0 %v173
    %601 = vmatprep.subr.mxu0 0.0
    %602 = vmatpush1.msra.mxu0 %v174
    %603 = vmatprep.subr.mxu0 0.0
    %604 = vmatpush1.msra.mxu0 %v175
    %605 = vmatprep.subr.mxu0 0.0
    %606 = vmatpush1.msra.mxu0 0.0
    %607 = vmatprep.subr.mxu0 0.0
    %608 = vmatpush1.msra.mxu0 0.0
    %609 = vmatprep.subr.mxu0 0.0
    %610 = vmatpush1.msra.mxu0 0.0
    %611 = vmatprep.subr.mxu0 0.0
    %612 = vmatpush1.msra.mxu0 0.0
    %613 = vmatprep.subr.mxu0 0.0
    %614 = vmatpush1.msra.mxu0 0.0
    %615 = vmatprep.subr.mxu0 0.0
    %616 = vmatpush1.msra.mxu0 0.0
    %617 = vmatprep.subr.mxu0 0.0
    %618 = vmatpush1.msra.mxu0 0.0
    %619 = vmatprep.subr.mxu0 0.0
    %620 = vmatpush1.msra.mxu0 0.0
    %621 = vmatprep.subr.mxu0 0.0
    %622 = vmatpush1.msra.mxu0 0.0
    %623 = vmatprep.subr.mxu0 0.0
    %624 = vmatpush1.msra.mxu0 0.0
    %625 = vmatprep.subr.mxu0 0.0
    %626 = vmatpush1.msra.mxu0 0.0
    %627 = vmatprep.subr.mxu0 0.0
    %628 = vmatpush1.msra.mxu0 0.0
    %629 = vmatprep.subr.mxu0 0.0
    %630 = vmatpush1.msra.mxu0 0.0
    %631 = vmatprep.subr.mxu0 0.0
    %632 = vmatpush1.msra.mxu0 0.0
    %633 = vmatprep.subr.mxu0 0.0
    %634 = vmatpush1.msra.mxu0 0.0
    %635 = vmatprep.subr.mxu0 0.0
    %636 = vmatpush1.msra.mxu0 0.0
    %637 = vmatprep.subr.mxu0 0.0
    %638 = vmatpush1.msra.mxu0 0.0
    %639 = vmatprep.subr.mxu0 0.0
    %640 = vmatpush1.msra.mxu0 0.0
    %641 = vmatprep.subr.mxu0 0.0
    %642 = vmatpush1.msra.mxu0 0.0
    %643 = vmatprep.subr.mxu0 0.0
    %644 = vmatpush1.msra.mxu0 0.0
    %645 = vmatprep.subr.mxu0 0.0
    %646 = vmatpush1.msra.mxu0 0.0
    %647 = vmatprep.subr.mxu0 0.0
    %648 = vmatpush1.msra.mxu0 0.0
    %649 = vmatprep.subr.mxu0 0.0
    %650 = vmatpush1.msra.mxu0 0.0
    %651 = vmatprep.subr.mxu0 0.0
    %652 = vmatpush1.msra.mxu0 0.0
    %653 = vmatprep.subr.mxu0 0.0
    %654 = vmatpush1.msra.mxu0 0.0
    %655 = vmatprep.subr.mxu0 0.0
    %656 = vmatpush1.msra.mxu0 0.0
    %657 = vmatprep.subr.mxu0 0.0
    %658 = vmatpush1.msra.mxu0 0.0
    %659 = vmatprep.subr.mxu0 0.0
    %660 = vmatpush1.msra.mxu0 0.0
    %661 = vmatprep.mubr.f32.mxu0 0.0
    %662 = vmatmul.mubr.f32.gmra.mrb[0].mxu0 %v595
    %v663 = vpop.f32.mrb[0].mxu0
    %v664 = vadd.f32 0.0, %v663
    %v665 = vpop.f32.mrb[0].mxu0
    %666 = vdwg.mxu0
    %v668 = vrot.slane %v664, 4
    %v670 = vadd.f32 %v164, %v668
    %v671 = vmul.f32 %v670, %v77
    %v672 = vtanh.pop %v671
    %v673 = vmul.f32 %v672, %v77
    %v674 = vadd.f32 %v673, %v78
    %v676 = vrot.slane %v480, 6
    %v678 = vmul.f32 %v674, %v676
    %680 = vrot.lane.b32.xlu0 %v674, 64
    %v681 = vpop.permute.xlu0 %680
    %v683 = vmul.f32 %v674, %v681
    %685 = vrot.lane.b32.xlu0 %v683, 32
    %v686 = vpop.permute.xlu0 %685
    %v688 = vadd.f32 %v678, %v686
    %v689 = vtanh.pop %v688
    %691 = vrot.lane.b32.xlu0 %v689, 64
    %v692 = vpop.permute.xlu0 %691
    %v694 = vmul.f32 %v674, %v692
    %696 = vrot.lane.b32.xlu0 %v694, 32
    %v697 = vpop.permute.xlu0 %696
    %v700 = vrot.slane %v591, 4
    %701 = vrot.lane.b32.xlu0 %v700, 64
    %v702 = vpop.permute.xlu0 %701
    %v704 = vsel %vm185, %v697, %v702
    %v706 = vrot.slane %v704, 4
    %v707 = vsel %vm292, %v706, 0
    %709 = vmatprep.subr.mxu0 0.0
    %710 = vmatpush1.msra.mxu0 %v176
    %711 = vmatprep.subr.mxu0 0.0
    %712 = vmatpush1.msra.mxu0 %v177
    %713 = vmatprep.subr.mxu0 0.0
    %714 = vmatpush1.msra.mxu0 %v178
    %715 = vmatprep.subr.mxu0 0.0
    %716 = vmatpush1.msra.mxu0 %v179
    %717 = vmatprep.subr.mxu0 0.0
    %718 = vmatpush1.msra.mxu0 %v180
    %719 = vmatprep.subr.mxu0 0.0
    %720 = vmatpush1.msra.mxu0 %v181
    %721 = vmatprep.subr.mxu0 0.0
    %722 = vmatpush1.msra.mxu0 %v182
    %723 = vmatprep.subr.mxu0 0.0
    %724 = vmatpush1.msra.mxu0 %v183
    %725 = vmatprep.subr.mxu0 0.0
    %726 = vmatpush1.msra.mxu0 0.0
    %727 = vmatprep.subr.mxu0 0.0
    %728 = vmatpush1.msra.mxu0 0.0
    %729 = vmatprep.subr.mxu0 0.0
    %730 = vmatpush1.msra.mxu0 0.0
    %731 = vmatprep.subr.mxu0 0.0
    %732 = vmatpush1.msra.mxu0 0.0
    %733 = vmatprep.subr.mxu0 0.0
    %734 = vmatpush1.msra.mxu0 0.0
    %735 = vmatprep.subr.mxu0 0.0
    %736 = vmatpush1.msra.mxu0 0.0
    %737 = vmatprep.subr.mxu0 0.0
    %738 = vmatpush1.msra.mxu0 0.0
    %739 = vmatprep.subr.mxu0 0.0
    %740 = vmatpush1.msra.mxu0 0.0
    %741 = vmatprep.subr.mxu0 0.0
    %742 = vmatpush1.msra.mxu0 0.0
    %743 = vmatprep.subr.mxu0 0.0
    %744 = vmatpush1.msra.mxu0 0.0
    %745 = vmatprep.subr.mxu0 0.0
    %746 = vmatpush1.msra.mxu0 0.0
    %747 = vmatprep.subr.mxu0 0.0
    %748 = vmatpush1.msra.mxu0 0.0
    %749 = vmatprep.subr.mxu0 0.0
    %750 = vmatpush1.msra.mxu0 0.0
    %751 = vmatprep.subr.mxu0 0.0
    %752 = vmatpush1.msra.mxu0 0.0
    %753 = vmatprep.subr.mxu0 0.0
    %754 = vmatpush1.msra.mxu0 0.0
    %755 = vmatprep.subr.mxu0 0.0
    %756 = vmatpush1.msra.mxu0 0.0
    %757 = vmatprep.subr.mxu0 0.0
    %758 = vmatpush1.msra.mxu0 0.0
    %759 = vmatprep.subr.mxu0 0.0
    %760 = vmatpush1.msra.mxu0 0.0
    %761 = vmatprep.subr.mxu0 0.0
    %762 = vmatpush1.msra.mxu0 0.0
    %763 = vmatprep.subr.mxu0 0.0
    %764 = vmatpush1.msra.mxu0 0.0
    %765 = vmatprep.subr.mxu0 0.0
    %766 = vmatpush1.msra.mxu0 0.0
    %767 = vmatprep.subr.mxu0 0.0
    %768 = vmatpush1.msra.mxu0 0.0
    %769 = vmatprep.subr.mxu0 0.0
    %770 = vmatpush1.msra.mxu0 0.0
    %771 = vmatprep.subr.mxu0 0.0
    %772 = vmatpush1.msra.mxu0 0.0
    %773 = vmatprep.mubr.f32.mxu0 0.0
    %774 = vmatmul.mubr.f32.gmra.mrb[0].mxu0 %v707
    %v775 = vpop.f32.mrb[0].mxu0
    %v776 = vadd.f32 %v290, %v775
    %v777 = vpop.f32.mrb[0].mxu0
    %778 = vdwg.mxu0
    %v779 = vmul.f32 %v776, %v77
    %v780 = vtanh.pop %v779
    %v781 = vmul.f32 %v780, %v77
    %v782 = vadd.f32 %v781, %v78
    %v783 = vmul.f32 %v782, %v585
    %785 = vrot.lane.b32.xlu0 %v782, 64
    %v786 = vpop.permute.xlu0 %785
    %v788 = vmul.f32 %v782, %v786
    %790 = vrot.lane.b32.xlu0 %v788, 32
    %v791 = vpop.permute.xlu0 %790
    %v793 = vadd.f32 %v783, %v791
    %v794 = vtanh.pop %v793
    %796 = vrot.lane.b32.xlu0 %v794, 64
    %v797 = vpop.permute.xlu0 %796
    %v799 = vmul.f32 %v782, %v797
    %v800 = vrot.slane %v694, 4
    %801 = vrot.lane.b32.xlu0 %v800, 32
    %v802 = vpop.permute.xlu0 %801
    %v803 = vsel %vm185, %v802, 0
    %805 = vmatprep.subr.mxu0 0.0
    %806 = vmatpush1.msra.mxu0 %v172
    %807 = vmatprep.subr.mxu0 0.0
    %808 = vmatpush1.msra.mxu0 %v173
    %809 = vmatprep.subr.mxu0 0.0
    %810 = vmatpush1.msra.mxu0 %v174
    %811 = vmatprep.subr.mxu0 0.0
    %812 = vmatpush1.msra.mxu0 %v175
    %813 = vmatprep.subr.mxu0 0.0
    %814 = vmatpush1.msra.mxu0 0.0
    %815 = vmatprep.subr.mxu0 0.0
    %816 = vmatpush1.msra.mxu0 0.0
    %817 = vmatprep.subr.mxu0 0.0
    %818 = vmatpush1.msra.mxu0 0.0
    %819 = vmatprep.subr.mxu0 0.0
    %820 = vmatpush1.msra.mxu0 0.0
    %821 = vmatprep.subr.mxu0 0.0
    %822 = vmatpush1.msra.mxu0 0.0
    %823 = vmatprep.subr.mxu0 0.0
    %824 = vmatpush1.msra.mxu0 0.0
    %825 = vmatprep.subr.mxu0 0.0
    %826 = vmatpush1.msra.mxu0 0.0
    %827 = vmatprep.subr.mxu0 0.0
    %828 = vmatpush1.msra.mxu0 0.0
    %829 = vmatprep.subr.mxu0 0.0
    %830 = vmatpush1.msra.mxu0 0.0
    %831 = vmatprep.subr.mxu0 0.0
    %832 = vmatpush1.msra.mxu0 0.0
    %833 = vmatprep.subr.mxu0 0.0
    %834 = vmatpush1.msra.mxu0 0.0
    %835 = vmatprep.subr.mxu0 0.0
    %836 = vmatpush1.msra.mxu0 0.0
    %837 = vmatprep.subr.mxu0 0.0
    %838 = vmatpush1.msra.mxu0 0.0
    %839 = vmatprep.subr.mxu0 0.0
    %840 = vmatpush1.msra.mxu0 0.0
    %841 = vmatprep.subr.mxu0 0.0
    %842 = vmatpush1.msra.mxu0 0.0
    %843 = vmatprep.subr.mxu0 0.0
    %844 = vmatpush1.msra.mxu0 0.0
    %845 = vmatprep.subr.mxu0 0.0
    %846 = vmatpush1.msra.mxu0 0.0
    %847 = vmatprep.subr.mxu0 0.0
    %848 = vmatpush1.msra.mxu0 0.0
    %849 = vmatprep.subr.mxu0 0.0
    %850 = vmatpush1.msra.mxu0 0.0
    %851 = vmatprep.subr.mxu0 0.0
    %852 = vmatpush1.msra.mxu0 0.0
    %853 = vmatprep.subr.mxu0 0.0
    %854 = vmatpush1.msra.mxu0 0.0
    %855 = vmatprep.subr.mxu0 0.0
    %856 = vmatpush1.msra.mxu0 0.0
    %857 = vmatprep.subr.mxu0 0.0
    %858 = vmatpush1.msra.mxu0 0.0
    %859 = vmatprep.subr.mxu0 0.0
    %860 = vmatpush1.msra.mxu0 0.0
    %861 = vmatprep.subr.mxu0 0.0
    %862 = vmatpush1.msra.mxu0 0.0
    %863 = vmatprep.subr.mxu0 0.0
    %864 = vmatpush1.msra.mxu0 0.0
    %865 = vmatprep.subr.mxu0 0.0
    %866 = vmatpush1.msra.mxu0 0.0
    %867 = vmatprep.subr.mxu0 0.0
    %868 = vmatpush1.msra.mxu0 0.0
    %869 = vmatprep.mubr.f32.mxu0 0.0
    %870 = vmatmul.mubr.f32.gmra.mrb[0].mxu0 %v803
    %v871 = vpop.f32.mrb[0].mxu0
    %v872 = vadd.f32 0.0, %v871
    %v873 = vpop.f32.mrb[0].mxu0
    %874 = vdwg.mxu0
    %v876 = vrot.slane %v872, 2
    %v878 = vadd.f32 %v164, %v876
    %v879 = vmul.f32 %v878, %v77
    %v880 = vtanh.pop %v879
    %v881 = vmul.f32 %v880, %v77
    %v882 = vadd.f32 %v881, %v78
    %v884 = vrot.slane %v688, 6
    %v886 = vmul.f32 %v882, %v884
    %888 = vrot.lane.b32.xlu0 %v882, 64
    %v889 = vpop.permute.xlu0 %888
    %v891 = vmul.f32 %v882, %v889
    %893 = vrot.lane.b32.xlu0 %v891, 32
    %v894 = vpop.permute.xlu0 %893
    %v896 = vadd.f32 %v886, %v894
    %v897 = vtanh.pop %v896
    %899 = vrot.lane.b32.xlu0 %v897, 64
    %v900 = vpop.permute.xlu0 %899
    %v902 = vmul.f32 %v882, %v900
    %904 = vrot.lane.b32.xlu0 %v902, 32
    %v905 = vpop.permute.xlu0 %904
    %v908 = vrot.slane %v799, 2
    %909 = vrot.lane.b32.xlu0 %v908, 64
    %v910 = vpop.permute.xlu0 %909
    %v912 = vsel %vm185, %v905, %v910
    %v914 = vrot.slane %v912, 6
    %v915 = vsel %vm292, %v914, 0
    %917 = vmatprep.subr.mxu0 0.0
    %918 = vmatpush1.msra.mxu0 %v176
    %919 = vmatprep.subr.mxu0 0.0
    %920 = vmatpush1.msra.mxu0 %v177
    %921 = vmatprep.subr.mxu0 0.0
    %922 = vmatpush1.msra.mxu0 %v178
    %923 = vmatprep.subr.mxu0 0.0
    %924 = vmatpush1.msra.mxu0 %v179
    %925 = vmatprep.subr.mxu0 0.0
    %926 = vmatpush1.msra.mxu0 %v180
    %927 = vmatprep.subr.mxu0 0.0
    %928 = vmatpush1.msra.mxu0 %v181
    %929 = vmatprep.subr.mxu0 0.0
    %930 = vmatpush1.msra.mxu0 %v182
    %931 = vmatprep.subr.mxu0 0.0
    %932 = vmatpush1.msra.mxu0 %v183
    %933 = vmatprep.subr.mxu0 0.0
    %934 = vmatpush1.msra.mxu0 0.0
    %935 = vmatprep.subr.mxu0 0.0
    %936 = vmatpush1.msra.mxu0 0.0
    %937 = vmatprep.subr.mxu0 0.0
    %938 = vmatpush1.msra.mxu0 0.0
    %939 = vmatprep.subr.mxu0 0.0
    %940 = vmatpush1.msra.mxu0 0.0
    %941 = vmatprep.subr.mxu0 0.0
    %942 = vmatpush1.msra.mxu0 0.0
    %943 = vmatprep.subr.mxu0 0.0
    %944 = vmatpush1.msra.mxu0 0.0
    %945 = vmatprep.subr.mxu0 0.0
    %946 = vmatpush1.msra.mxu0 0.0
    %947 = vmatprep.subr.mxu0 0.0
    %948 = vmatpush1.msra.mxu0 0.0
    %949 = vmatprep.subr.mxu0 0.0
    %950 = vmatpush1.msra.mxu0 0.0
    %951 = vmatprep.subr.mxu0 0.0
    %952 = vmatpush1.msra.mxu0 0.0
    %953 = vmatprep.subr.mxu0 0.0
    %954 = vmatpush1.msra.mxu0 0.0
    %955 = vmatprep.subr.mxu0 0.0
    %956 = vmatpush1.msra.mxu0 0.0
    %957 = vmatprep.subr.mxu0 0.0
    %958 = vmatpush1.msra.mxu0 0.0
    %959 = vmatprep.subr.mxu0 0.0
    %960 = vmatpush1.msra.mxu0 0.0
    %961 = vmatprep.subr.mxu0 0.0
    %962 = vmatpush1.msra.mxu0 0.0
    %963 = vmatprep.subr.mxu0 0.0
    %964 = vmatpush1.msra.mxu0 0.0
    %965 = vmatprep.subr.mxu0 0.0
    %966 = vmatpush1.msra.mxu0 0.0
    %967 = vmatprep.subr.mxu0 0.0
    %968 = vmatpush1.msra.mxu0 0.0
    %969 = vmatprep.subr.mxu0 0.0
    %970 = vmatpush1.msra.mxu0 0.0
    %971 = vmatprep.subr.mxu0 0.0
    %972 = vmatpush1.msra.mxu0 0.0
    %973 = vmatprep.subr.mxu0 0.0
    %974 = vmatpush1.msra.mxu0 0.0
    %975 = vmatprep.subr.mxu0 0.0
    %976 = vmatpush1.msra.mxu0 0.0
    %977 = vmatprep.subr.mxu0 0.0
    %978 = vmatpush1.msra.mxu0 0.0
    %979 = vmatprep.subr.mxu0 0.0
    %980 = vmatpush1.msra.mxu0 0.0
    %981 = vmatprep.mubr.f32.mxu0 0.0
    %982 = vmatmul.mubr.f32.gmra.mrb[0].mxu0 %v915
    %v983 = vpop.f32.mrb[0].mxu0
    %v984 = vadd.f32 %v290, %v983
    %v985 = vpop.f32.mrb[0].mxu0
    %986 = vdwg.mxu0
    %v987 = vmul.f32 %v984, %v77
    %v988 = vtanh.pop %v987
    %v989 = vmul.f32 %v988, %v77
    %v990 = vadd.f32 %v989, %v78
    %v991 = vmul.f32 %v990, %v793
    %993 = vrot.lane.b32.xlu0 %v990, 64
    %v994 = vpop.permute.xlu0 %993
    %v996 = vmul.f32 %v990, %v994
    %998 = vrot.lane.b32.xlu0 %v996, 32
    %v999 = vpop.permute.xlu0 %998
    %v1001 = vadd.f32 %v991, %v999
    %v1002 = vtanh.pop %v1001
    %1004 = vrot.lane.b32.xlu0 %v1002, 64
    %v1005 = vpop.permute.xlu0 %1004
    %v1007 = vmul.f32 %v990, %v1005
    %v1008 = vrot.slane %v902, 6
    %1009 = vrot.lane.b32.xlu0 %v1008, 32
    %v1010 = vpop.permute.xlu0 %1009
    %v1011 = vsel %vm185, %v1010, 0
    %1013 = vmatprep.subr.mxu0 0.0
    %1014 = vmatpush1.msra.mxu0 %v172
    %1015 = vmatprep.subr.mxu0 0.0
    %1016 = vmatpush1.msra.mxu0 %v173
    %1017 = vmatprep.subr.mxu0 0.0
    %1018 = vmatpush1.msra.mxu0 %v174
    %1019 = vmatprep.subr.mxu0 0.0
    %1020 = vmatpush1.msra.mxu0 %v175
    %1021 = vmatprep.subr.mxu0 0.0
    %1022 = vmatpush1.msra.mxu0 0.0
    %1023 = vmatprep.subr.mxu0 0.0
    %1024 = vmatpush1.msra.mxu0 0.0
    %1025 = vmatprep.subr.mxu0 0.0
    %1026 = vmatpush1.msra.mxu0 0.0
    %1027 = vmatprep.subr.mxu0 0.0
    %1028 = vmatpush1.msra.mxu0 0.0
    %1029 = vmatprep.subr.mxu0 0.0
    %1030 = vmatpush1.msra.mxu0 0.0
    %1031 = vmatprep.subr.mxu0 0.0
    %1032 = vmatpush1.msra.mxu0 0.0
    %1033 = vmatprep.subr.mxu0 0.0
    %1034 = vmatpush1.msra.mxu0 0.0
    %1035 = vmatprep.subr.mxu0 0.0
    %1036 = vmatpush1.msra.mxu0 0.0
    %1037 = vmatprep.subr.mxu0 0.0
    %1038 = vmatpush1.msra.mxu0 0.0
    %1039 = vmatprep.subr.mxu0 0.0
    %1040 = vmatpush1.msra.mxu0 0.0
    %1041 = vmatprep.subr.mxu0 0.0
    %1042 = vmatpush1.msra.mxu0 0.0
    %1043 = vmatprep.subr.mxu0 0.0
    %1044 = vmatpush1.msra.mxu0 0.0
    %1045 = vmatprep.subr.mxu0 0.0
    %1046 = vmatpush1.msra.mxu0 0.0
    %1047 = vmatprep.subr.mxu0 0.0
    %1048 = vmatpush1.msra.mxu0 0.0
    %1049 = vmatprep.subr.mxu0 0.0
    %1050 = vmatpush1.msra.mxu0 0.0
    %1051 = vmatprep.subr.mxu0 0.0
    %1052 = vmatpush1.msra.mxu0 0.0
    %1053 = vmatprep.subr.mxu0 0.0
    %1054 = vmatpush1.msra.mxu0 0.0
    %1055 = vmatprep.subr.mxu0 0.0
    %1056 = vmatpush1.msra.mxu0 0.0
    %1057 = vmatprep.subr.mxu0 0.0
    %1058 = vmatpush1.msra.mxu0 0.0
    %1059 = vmatprep.subr.mxu0 0.0
    %1060 = vmatpush1.msra.mxu0 0.0
    %1061 = vmatprep.subr.mxu0 0.0
    %1062 = vmatpush1.msra.mxu0 0.0
    %1063 = vmatprep.subr.mxu0 0.0
    %1064 = vmatpush1.msra.mxu0 0.0
    %1065 = vmatprep.subr.mxu0 0.0
    %1066 = vmatpush1.msra.mxu0 0.0
    %1067 = vmatprep.subr.mxu0 0.0
    %1068 = vmatpush1.msra.mxu0 0.0
    %1069 = vmatprep.subr.mxu0 0.0
    %1070 = vmatpush1.msra.mxu0 0.0
    %1071 = vmatprep.subr.mxu0 0.0
    %1072 = vmatpush1.msra.mxu0 0.0
    %1073 = vmatprep.subr.mxu0 0.0
    %1074 = vmatpush1.msra.mxu0 0.0
    %1075 = vmatprep.subr.mxu0 0.0
    %1076 = vmatpush1.msra.mxu0 0.0
    %1077 = vmatprep.mubr.f32.mxu0 0.0
    %1078 = vmatmul.mubr.f32.gmra.mrb[0].mxu0 %v1011
    %v1079 = vpop.f32.mrb[0].mxu0
    %v1080 = vadd.f32 0.0, %v1079
    %v1081 = vpop.f32.mrb[0].mxu0
    %1082 = vdwg.mxu0
    %v1083 = vadd.f32 %v169, %v1080
    %v1084 = vmul.f32 %v1083, %v77
    %v1085 = vtanh.pop %v1084
    %v1086 = vmul.f32 %v1085, %v77
    %v1087 = vadd.f32 %v1086, %v78
    %v1089 = vrot.slane %v896, 6
    %v1091 = vmul.f32 %v1087, %v1089
    %1093 = vrot.lane.b32.xlu0 %v1087, 64
    %v1094 = vpop.permute.xlu0 %1093
    %v1096 = vmul.f32 %v1087, %v1094
    %1098 = vrot.lane.b32.xlu0 %v1096, 32
    %v1099 = vpop.permute.xlu0 %1098
    %v1101 = vadd.f32 %v1091, %v1099
    %v1102 = vtanh.pop %v1101
    %1104 = vrot.lane.b32.xlu0 %v1102, 64
    %v1105 = vpop.permute.xlu0 %1104
    %v1107 = vmul.f32 %v1087, %v1105
    %1109 = vrot.lane.b32.xlu0 %v1107, 32
    %v1110 = vpop.permute.xlu0 %1109
    %1113 = vrot.lane.b32.xlu0 %v1007, 64
    %v1114 = vpop.permute.xlu0 %1113
    %v1116 = vsel %vm185, %v1110, %v1114
    %v1118 = vsel %vm292, %v1116, 0
    %1120 = vmatprep.subr.mxu0 0.0
    %1121 = vmatpush1.msra.mxu0 %v176
    %1122 = vmatprep.subr.mxu0 0.0
    %1123 = vmatpush1.msra.mxu0 %v177
    %1124 = vmatprep.subr.mxu0 0.0
    %1125 = vmatpush1.msra.mxu0 %v178
    %1126 = vmatprep.subr.mxu0 0.0
    %1127 = vmatpush1.msra.mxu0 %v179
    %1128 = vmatprep.subr.mxu0 0.0
    %1129 = vmatpush1.msra.mxu0 %v180
    %1130 = vmatprep.subr.mxu0 0.0
    %1131 = vmatpush1.msra.mxu0 %v181
    %1132 = vmatprep.subr.mxu0 0.0
    %1133 = vmatpush1.msra.mxu0 %v182
    %1134 = vmatprep.subr.mxu0 0.0
    %1135 = vmatpush1.msra.mxu0 %v183
    %1136 = vmatprep.subr.mxu0 0.0
    %1137 = vmatpush1.msra.mxu0 0.0
    %1138 = vmatprep.subr.mxu0 0.0
    %1139 = vmatpush1.msra.mxu0 0.0
    %1140 = vmatprep.subr.mxu0 0.0
    %1141 = vmatpush1.msra.mxu0 0.0
    %1142 = vmatprep.subr.mxu0 0.0
    %1143 = vmatpush1.msra.mxu0 0.0
    %1144 = vmatprep.subr.mxu0 0.0
    %1145 = vmatpush1.msra.mxu0 0.0
    %1146 = vmatprep.subr.mxu0 0.0
    %1147 = vmatpush1.msra.mxu0 0.0
    %1148 = vmatprep.subr.mxu0 0.0
    %1149 = vmatpush1.msra.mxu0 0.0
    %1150 = vmatprep.subr.mxu0 0.0
    %1151 = vmatpush1.msra.mxu0 0.0
    %1152 = vmatprep.subr.mxu0 0.0
    %1153 = vmatpush1.msra.mxu0 0.0
    %1154 = vmatprep.subr.mxu0 0.0
    %1155 = vmatpush1.msra.mxu0 0.0
    %1156 = vmatprep.subr.mxu0 0.0
    %1157 = vmatpush1.msra.mxu0 0.0
    %1158 = vmatprep.subr.mxu0 0.0
    %1159 = vmatpush1.msra.mxu0 0.0
    %1160 = vmatprep.subr.mxu0 0.0
    %1161 = vmatpush1.msra.mxu0 0.0
    %1162 = vmatprep.subr.mxu0 0.0
    %1163 = vmatpush1.msra.mxu0 0.0
    %1164 = vmatprep.subr.mxu0 0.0
    %1165 = vmatpush1.msra.mxu0 0.0
    %1166 = vmatprep.subr.mxu0 0.0
    %1167 = vmatpush1.msra.mxu0 0.0
    %1168 = vmatprep.subr.mxu0 0.0
    %1169 = vmatpush1.msra.mxu0 0.0
    %1170 = vmatprep.subr.mxu0 0.0
    %1171 = vmatpush1.msra.mxu0 0.0
    %1172 = vmatprep.subr.mxu0 0.0
    %1173 = vmatpush1.msra.mxu0 0.0
    %1174 = vmatprep.subr.mxu0 0.0
    %1175 = vmatpush1.msra.mxu0 0.0
    %1176 = vmatprep.subr.mxu0 0.0
    %1177 = vmatpush1.msra.mxu0 0.0
    %1178 = vmatprep.subr.mxu0 0.0
    %1179 = vmatpush1.msra.mxu0 0.0
    %1180 = vmatprep.subr.mxu0 0.0
    %1181 = vmatpush1.msra.mxu0 0.0
    %1182 = vmatprep.subr.mxu0 0.0
    %1183 = vmatpush1.msra.mxu0 0.0
    %1184 = vmatprep.mubr.f32.mxu0 0.0
    %1185 = vmatmul.mubr.f32.gmra.mrb[0].mxu0 %v1118
    %v1186 = vpop.f32.mrb[0].mxu0
    %v1187 = vadd.f32 %v290, %v1186
    %v1188 = vpop.f32.mrb[0].mxu0
    %1189 = vdwg.mxu0
    %v1190 = vmul.f32 %v1187, %v77
    %v1191 = vtanh.pop %v1190
    %v1192 = vmul.f32 %v1191, %v77
    %v1193 = vadd.f32 %v1192, %v78
    %v1194 = vmul.f32 %v1193, %v1001
    %1196 = vrot.lane.b32.xlu0 %v1193, 64
    %v1197 = vpop.permute.xlu0 %1196
    %v1199 = vmul.f32 %v1193, %v1197
    %1201 = vrot.lane.b32.xlu0 %v1199, 32
    %v1202 = vpop.permute.xlu0 %1201
    %v1204 = vadd.f32 %v1194, %v1202
    %v1205 = vtanh.pop %v1204
    %1207 = vrot.lane.b32.xlu0 %v1205, 64
    %v1208 = vpop.permute.xlu0 %1207
    %v1210 = vmul.f32 %v1193, %v1208
    %v1211 = vsel %vm185, %v1110, 0
    %1213 = vmatprep.subr.mxu0 0.0
    %1214 = vmatpush1.msra.mxu0 %v172
    %1215 = vmatprep.subr.mxu0 0.0
    %1216 = vmatpush1.msra.mxu0 %v173
    %1217 = vmatprep.subr.mxu0 0.0
    %1218 = vmatpush1.msra.mxu0 %v174
    %1219 = vmatprep.subr.mxu0 0.0
    %1220 = vmatpush1.msra.mxu0 %v175
    %1221 = vmatprep.subr.mxu0 0.0
    %1222 = vmatpush1.msra.mxu0 0.0
    %1223 = vmatprep.subr.mxu0 0.0
    %1224 = vmatpush1.msra.mxu0 0.0
    %1225 = vmatprep.subr.mxu0 0.0
    %1226 = vmatpush1.msra.mxu0 0.0
    %1227 = vmatprep.subr.mxu0 0.0
    %1228 = vmatpush1.msra.mxu0 0.0
    %1229 = vmatprep.subr.mxu0 0.0
    %1230 = vmatpush1.msra.mxu0 0.0
    %1231 = vmatprep.subr.mxu0 0.0
    %1232 = vmatpush1.msra.mxu0 0.0
    %1233 = vmatprep.subr.mxu0 0.0
    %1234 = vmatpush1.msra.mxu0 0.0
    %1235 = vmatprep.subr.mxu0 0.0
    %1236 = vmatpush1.msra.mxu0 0.0
    %1237 = vmatprep.subr.mxu0 0.0
    %1238 = vmatpush1.msra.mxu0 0.0
    %1239 = vmatprep.subr.mxu0 0.0
    %1240 = vmatpush1.msra.mxu0 0.0
    %1241 = vmatprep.subr.mxu0 0.0
    %1242 = vmatpush1.msra.mxu0 0.0
    %1243 = vmatprep.subr.mxu0 0.0
    %1244 = vmatpush1.msra.mxu0 0.0
    %1245 = vmatprep.subr.mxu0 0.0
    %1246 = vmatpush1.msra.mxu0 0.0
    %1247 = vmatprep.subr.mxu0 0.0
    %1248 = vmatpush1.msra.mxu0 0.0
    %1249 = vmatprep.subr.mxu0 0.0
    %1250 = vmatpush1.msra.mxu0 0.0
    %1251 = vmatprep.subr.mxu0 0.0
    %1252 = vmatpush1.msra.mxu0 0.0
    %1253 = vmatprep.subr.mxu0 0.0
    %1254 = vmatpush1.msra.mxu0 0.0
    %1255 = vmatprep.subr.mxu0 0.0
    %1256 = vmatpush1.msra.mxu0 0.0
    %1257 = vmatprep.subr.mxu0 0.0
    %1258 = vmatpush1.msra.mxu0 0.0
    %1259 = vmatprep.subr.mxu0 0.0
    %1260 = vmatpush1.msra.mxu0 0.0
    %1261 = vmatprep.subr.mxu0 0.0
    %1262 = vmatpush1.msra.mxu0 0.0
    %1263 = vmatprep.subr.mxu0 0.0
    %1264 = vmatpush1.msra.mxu0 0.0
    %1265 = vmatprep.subr.mxu0 0.0
    %1266 = vmatpush1.msra.mxu0 0.0
    %1267 = vmatprep.subr.mxu0 0.0
    %1268 = vmatpush1.msra.mxu0 0.0
    %1269 = vmatprep.subr.mxu0 0.0
    %1270 = vmatpush1.msra.mxu0 0.0
    %1271 = vmatprep.subr.mxu0 0.0
    %1272 = vmatpush1.msra.mxu0 0.0
    %1273 = vmatprep.subr.mxu0 0.0
    %1274 = vmatpush1.msra.mxu0 0.0
    %1275 = vmatprep.subr.mxu0 0.0
    %1276 = vmatpush1.msra.mxu0 0.0
    %1277 = vmatprep.mubr.f32.mxu0 0.0
    %1278 = vmatmul.mubr.f32.gmra.mrb[0].mxu0 %v1211
    %v1279 = vpop.f32.mrb[0].mxu0
    %v1280 = vadd.f32 0.0, %v1279
    %v1281 = vpop.f32.mrb[0].mxu0
    %1282 = vdwg.mxu0
    %v1284 = vrot.slane %v1280, 6
    %v1286 = vadd.f32 %v169, %v1284
    %v1287 = vmul.f32 %v1286, %v77
    %v1288 = vtanh.pop %v1287
    %v1289 = vmul.f32 %v1288, %v77
    %v1290 = vadd.f32 %v1289, %v78
    %v1292 = vrot.slane %v1101, 6
    %v1294 = vmul.f32 %v1290, %v1292
    %1296 = vrot.lane.b32.xlu0 %v1290, 64
    %v1297 = vpop.permute.xlu0 %1296
    %v1299 = vmul.f32 %v1290, %v1297
    %1301 = vrot.lane.b32.xlu0 %v1299, 32
    %v1302 = vpop.permute.xlu0 %1301
    %v1304 = vadd.f32 %v1294, %v1302
    %v1305 = vtanh.pop %v1304
    %1307 = vrot.lane.b32.xlu0 %v1305, 64
    %v1308 = vpop.permute.xlu0 %1307
    %v1310 = vmul.f32 %v1290, %v1308
    %1312 = vrot.lane.b32.xlu0 %v1310, 32
    %v1313 = vpop.permute.xlu0 %1312
    %v1316 = vrot.slane %v1210, 6
    %1317 = vrot.lane.b32.xlu0 %v1316, 64
    %v1318 = vpop.permute.xlu0 %1317
    %v1320 = vsel %vm185, %v1313, %v1318
    %v1322 = vrot.slane %v1320, 2
    %v1323 = vsel %vm292, %v1322, 0
    %1325 = vmatprep.subr.mxu0 0.0
    %1326 = vmatpush1.msra.mxu0 %v176
    %1327 = vmatprep.subr.mxu0 0.0
    %1328 = vmatpush1.msra.mxu0 %v177
    %1329 = vmatprep.subr.mxu0 0.0
    %1330 = vmatpush1.msra.mxu0 %v178
    %1331 = vmatprep.subr.mxu0 0.0
    %1332 = vmatpush1.msra.mxu0 %v179
    %1333 = vmatprep.subr.mxu0 0.0
    %1334 = vmatpush1.msra.mxu0 %v180
    %1335 = vmatprep.subr.mxu0 0.0
    %1336 = vmatpush1.msra.mxu0 %v181
    %1337 = vmatprep.subr.mxu0 0.0
    %1338 = vmatpush1.msra.mxu0 %v182
    %1339 = vmatprep.subr.mxu0 0.0
    %1340 = vmatpush1.msra.mxu0 %v183
    %1341 = vmatprep.subr.mxu0 0.0
    %1342 = vmatpush1.msra.mxu0 0.0
    %1343 = vmatprep.subr.mxu0 0.0
    %1344 = vmatpush1.msra.mxu0 0.0
    %1345 = vmatprep.subr.mxu0 0.0
    %1346 = vmatpush1.msra.mxu0 0.0
    %1347 = vmatprep.subr.mxu0 0.0
    %1348 = vmatpush1.msra.mxu0 0.0
    %1349 = vmatprep.subr.mxu0 0.0
    %1350 = vmatpush1.msra.mxu0 0.0
    %1351 = vmatprep.subr.mxu0 0.0
    %1352 = vmatpush1.msra.mxu0 0.0
    %1353 = vmatprep.subr.mxu0 0.0
    %1354 = vmatpush1.msra.mxu0 0.0
    %1355 = vmatprep.subr.mxu0 0.0
    %1356 = vmatpush1.msra.mxu0 0.0
    %1357 = vmatprep.subr.mxu0 0.0
    %1358 = vmatpush1.msra.mxu0 0.0
    %1359 = vmatprep.subr.mxu0 0.0
    %1360 = vmatpush1.msra.mxu0 0.0
    %1361 = vmatprep.subr.mxu0 0.0
    %1362 = vmatpush1.msra.mxu0 0.0
    %1363 = vmatprep.subr.mxu0 0.0
    %1364 = vmatpush1.msra.mxu0 0.0
    %1365 = vmatprep.subr.mxu0 0.0
    %1366 = vmatpush1.msra.mxu0 0.0
    %1367 = vmatprep.subr.mxu0 0.0
    %1368 = vmatpush1.msra.mxu0 0.0
    %1369 = vmatprep.subr.mxu0 0.0
    %1370 = vmatpush1.msra.mxu0 0.0
    %1371 = vmatprep.subr.mxu0 0.0
    %1372 = vmatpush1.msra.mxu0 0.0
    %1373 = vmatprep.subr.mxu0 0.0
    %1374 = vmatpush1.msra.mxu0 0.0
    %1375 = vmatprep.subr.mxu0 0.0
    %1376 = vmatpush1.msra.mxu0 0.0
    %1377 = vmatprep.subr.mxu0 0.0
    %1378 = vmatpush1.msra.mxu0 0.0
    %1379 = vmatprep.subr.mxu0 0.0
    %1380 = vmatpush1.msra.mxu0 0.0
    %1381 = vmatprep.subr.mxu0 0.0
    %1382 = vmatpush1.msra.mxu0 0.0
    %1383 = vmatprep.subr.mxu0 0.0
    %1384 = vmatpush1.msra.mxu0 0.0
    %1385 = vmatprep.subr.mxu0 0.0
    %1386 = vmatpush1.msra.mxu0 0.0
    %1387 = vmatprep.subr.mxu0 0.0
    %1388 = vmatpush1.msra.mxu0 0.0
    %1389 = vmatprep.mubr.f32.mxu0 0.0
    %1390 = vmatmul.mubr.f32.gmra.mrb[0].mxu0 %v1323
    %v1391 = vpop.f32.mrb[0].mxu0
    %v1392 = vadd.f32 %v290, %v1391
    %v1393 = vpop.f32.mrb[0].mxu0
    %1394 = vdwg.mxu0
    %v1395 = vmul.f32 %v1392, %v77
    %v1396 = vtanh.pop %v1395
    %v1397 = vmul.f32 %v1396, %v77
    %v1398 = vadd.f32 %v1397, %v78
    %v1399 = vmul.f32 %v1398, %v1204
    %1401 = vrot.lane.b32.xlu0 %v1398, 64
    %v1402 = vpop.permute.xlu0 %1401
    %v1404 = vmul.f32 %v1398, %v1402
    %1406 = vrot.lane.b32.xlu0 %v1404, 32
    %v1407 = vpop.permute.xlu0 %1406
    %v1409 = vadd.f32 %v1399, %v1407
    %v1410 = vtanh.pop %v1409
    %1412 = vrot.lane.b32.xlu0 %v1410, 64
    %v1413 = vpop.permute.xlu0 %1412
    %v1415 = vmul.f32 %v1398, %v1413
    %v1416 = vrot.slane %v1310, 2
    %1417 = vrot.lane.b32.xlu0 %v1416, 32
    %v1418 = vpop.permute.xlu0 %1417
    %v1419 = vsel %vm185, %v1418, 0
    %1421 = vmatprep.subr.mxu0 0.0
    %1422 = vmatpush1.msra.mxu0 %v172
    %1423 = vmatprep.subr.mxu0 0.0
    %1424 = vmatpush1.msra.mxu0 %v173
    %1425 = vmatprep.subr.mxu0 0.0
    %1426 = vmatpush1.msra.mxu0 %v174
    %1427 = vmatprep.subr.mxu0 0.0
    %1428 = vmatpush1.msra.mxu0 %v175
    %1429 = vmatprep.subr.mxu0 0.0
    %1430 = vmatpush1.msra.mxu0 0.0
    %1431 = vmatprep.subr.mxu0 0.0
    %1432 = vmatpush1.msra.mxu0 0.0
    %1433 = vmatprep.subr.mxu0 0.0
    %1434 = vmatpush1.msra.mxu0 0.0
    %1435 = vmatprep.subr.mxu0 0.0
    %1436 = vmatpush1.msra.mxu0 0.0
    %1437 = vmatprep.subr.mxu0 0.0
    %1438 = vmatpush1.msra.mxu0 0.0
    %1439 = vmatprep.subr.mxu0 0.0
    %1440 = vmatpush1.msra.mxu0 0.0
    %1441 = vmatprep.subr.mxu0 0.0
    %1442 = vmatpush1.msra.mxu0 0.0
    %1443 = vmatprep.subr.mxu0 0.0
    %1444 = vmatpush1.msra.mxu0 0.0
    %1445 = vmatprep.subr.mxu0 0.0
    %1446 = vmatpush1.msra.mxu0 0.0
    %1447 = vmatprep.subr.mxu0 0.0
    %1448 = vmatpush1.msra.mxu0 0.0
    %1449 = vmatprep.subr.mxu0 0.0
    %1450 = vmatpush1.msra.mxu0 0.0
    %1451 = vmatprep.subr.mxu0 0.0
    %1452 = vmatpush1.msra.mxu0 0.0
    %1453 = vmatprep.subr.mxu0 0.0
    %1454 = vmatpush1.msra.mxu0 0.0
    %1455 = vmatprep.subr.mxu0 0.0
    %1456 = vmatpush1.msra.mxu0 0.0
    %1457 = vmatprep.subr.mxu0 0.0
    %1458 = vmatpush1.msra.mxu0 0.0
    %1459 = vmatprep.subr.mxu0 0.0
    %1460 = vmatpush1.msra.mxu0 0.0
    %1461 = vmatprep.subr.mxu0 0.0
    %1462 = vmatpush1.msra.mxu0 0.0
    %1463 = vmatprep.subr.mxu0 0.0
    %1464 = vmatpush1.msra.mxu0 0.0
    %1465 = vmatprep.subr.mxu0 0.0
    %1466 = vmatpush1.msra.mxu0 0.0
    %1467 = vmatprep.subr.mxu0 0.0
    %1468 = vmatpush1.msra.mxu0 0.0
    %1469 = vmatprep.subr.mxu0 0.0
    %1470 = vmatpush1.msra.mxu0 0.0
    %1471 = vmatprep.subr.mxu0 0.0
    %1472 = vmatpush1.msra.mxu0 0.0
    %1473 = vmatprep.subr.mxu0 0.0
    %1474 = vmatpush1.msra.mxu0 0.0
    %1475 = vmatprep.subr.mxu0 0.0
    %1476 = vmatpush1.msra.mxu0 0.0
    %1477 = vmatprep.subr.mxu0 0.0
    %1478 = vmatpush1.msra.mxu0 0.0
    %1479 = vmatprep.subr.mxu0 0.0
    %1480 = vmatpush1.msra.mxu0 0.0
    %1481 = vmatprep.subr.mxu0 0.0
    %1482 = vmatpush1.msra.mxu0 0.0
    %1483 = vmatprep.subr.mxu0 0.0
    %1484 = vmatpush1.msra.mxu0 0.0
    %1485 = vmatprep.mubr.f32.mxu0 0.0
    %1486 = vmatmul.mubr.f32.gmra.mrb[0].mxu0 %v1419
    %v1487 = vpop.f32.mrb[0].mxu0
    %v1488 = vadd.f32 0.0, %v1487
    %v1489 = vpop.f32.mrb[0].mxu0
    %1490 = vdwg.mxu0
    %v1492 = vrot.slane %v1488, 4
    %v1494 = vadd.f32 %v169, %v1492
    %v1495 = vmul.f32 %v1494, %v77
    %v1496 = vtanh.pop %v1495
    %v1497 = vmul.f32 %v1496, %v77
    %v1498 = vadd.f32 %v1497, %v78
    %v1500 = vrot.slane %v1304, 6
    %v1502 = vmul.f32 %v1498, %v1500
    %1504 = vrot.lane.b32.xlu0 %v1498, 64
    %v1505 = vpop.permute.xlu0 %1504
    %v1507 = vmul.f32 %v1498, %v1505
    %1509 = vrot.lane.b32.xlu0 %v1507, 32
    %v1510 = vpop.permute.xlu0 %1509
    %v1512 = vadd.f32 %v1502, %v1510
    %v1513 = vtanh.pop %v1512
    %1515 = vrot.lane.b32.xlu0 %v1513, 64
    %v1516 = vpop.permute.xlu0 %1515
    %v1518 = vmul.f32 %v1498, %v1516
    %1520 = vrot.lane.b32.xlu0 %v1518, 32
    %v1521 = vpop.permute.xlu0 %1520
    %v1524 = vrot.slane %v1415, 4
    %1525 = vrot.lane.b32.xlu0 %v1524, 64
    %v1526 = vpop.permute.xlu0 %1525
    %v1528 = vsel %vm185, %v1521, %v1526
    %v1530 = vrot.slane %v1528, 4
    %v1531 = vsel %vm292, %v1530, 0
    %1533 = vmatprep.subr.mxu0 0.0
    %1534 = vmatpush1.msra.mxu0 %v176
    %1535 = vmatprep.subr.mxu0 0.0
    %1536 = vmatpush1.msra.mxu0 %v177
    %1537 = vmatprep.subr.mxu0 0.0
    %1538 = vmatpush1.msra.mxu0 %v178
    %1539 = vmatprep.subr.mxu0 0.0
    %1540 = vmatpush1.msra.mxu0 %v179
    %1541 = vmatprep.subr.mxu0 0.0
    %1542 = vmatpush1.msra.mxu0 %v180
    %1543 = vmatprep.subr.mxu0 0.0
    %1544 = vmatpush1.msra.mxu0 %v181
    %1545 = vmatprep.subr.mxu0 0.0
    %1546 = vmatpush1.msra.mxu0 %v182
    %1547 = vmatprep.subr.mxu0 0.0
    %1548 = vmatpush1.msra.mxu0 %v183
    %1549 = vmatprep.subr.mxu0 0.0
    %1550 = vmatpush1.msra.mxu0 0.0
    %1551 = vmatprep.subr.mxu0 0.0
    %1552 = vmatpush1.msra.mxu0 0.0
    %1553 = vmatprep.subr.mxu0 0.0
    %1554 = vmatpush1.msra.mxu0 0.0
    %1555 = vmatprep.subr.mxu0 0.0
    %1556 = vmatpush1.msra.mxu0 0.0
    %1557 = vmatprep.subr.mxu0 0.0
    %1558 = vmatpush1.msra.mxu0 0.0
    %1559 = vmatprep.subr.mxu0 0.0
    %1560 = vmatpush1.msra.mxu0 0.0
    %1561 = vmatprep.subr.mxu0 0.0
    %1562 = vmatpush1.msra.mxu0 0.0
    %1563 = vmatprep.subr.mxu0 0.0
    %1564 = vmatpush1.msra.mxu0 0.0
    %1565 = vmatprep.subr.mxu0 0.0
    %1566 = vmatpush1.msra.mxu0 0.0
    %1567 = vmatprep.subr.mxu0 0.0
    %1568 = vmatpush1.msra.mxu0 0.0
    %1569 = vmatprep.subr.mxu0 0.0
    %1570 = vmatpush1.msra.mxu0 0.0
    %1571 = vmatprep.subr.mxu0 0.0
    %1572 = vmatpush1.msra.mxu0 0.0
    %1573 = vmatprep.subr.mxu0 0.0
    %1574 = vmatpush1.msra.mxu0 0.0
    %1575 = vmatprep.subr.mxu0 0.0
    %1576 = vmatpush1.msra.mxu0 0.0
    %1577 = vmatprep.subr.mxu0 0.0
    %1578 = vmatpush1.msra.mxu0 0.0
    %1579 = vmatprep.subr.mxu0 0.0
    %1580 = vmatpush1.msra.mxu0 0.0
    %1581 = vmatprep.subr.mxu0 0.0
    %1582 = vmatpush1.msra.mxu0 0.0
    %1583 = vmatprep.subr.mxu0 0.0
    %1584 = vmatpush1.msra.mxu0 0.0
    %1585 = vmatprep.subr.mxu0 0.0
    %1586 = vmatpush1.msra.mxu0 0.0
    %1587 = vmatprep.subr.mxu0 0.0
    %1588 = vmatpush1.msra.mxu0 0.0
    %1589 = vmatprep.subr.mxu0 0.0
    %1590 = vmatpush1.msra.mxu0 0.0
    %1591 = vmatprep.subr.mxu0 0.0
    %1592 = vmatpush1.msra.mxu0 0.0
    %1593 = vmatprep.subr.mxu0 0.0
    %1594 = vmatpush1.msra.mxu0 0.0
    %1595 = vmatprep.subr.mxu0 0.0
    %1596 = vmatpush1.msra.mxu0 0.0
    %1597 = vmatprep.mubr.f32.mxu0 0.0
    %1598 = vmatmul.mubr.f32.gmra.mrb[0].mxu0 %v1531
    %v1599 = vpop.f32.mrb[0].mxu0
    %v1600 = vadd.f32 %v290, %v1599
    %v1601 = vpop.f32.mrb[0].mxu0
    %1602 = vdwg.mxu0
    %v1603 = vmul.f32 %v1600, %v77
    %v1604 = vtanh.pop %v1603
    %v1605 = vmul.f32 %v1604, %v77
    %v1606 = vadd.f32 %v1605, %v78
    %v1607 = vmul.f32 %v1606, %v1409
    %1609 = vrot.lane.b32.xlu0 %v1606, 64
    %v1610 = vpop.permute.xlu0 %1609
    %v1612 = vmul.f32 %v1606, %v1610
    %1614 = vrot.lane.b32.xlu0 %v1612, 32
    %v1615 = vpop.permute.xlu0 %1614
    %v1617 = vadd.f32 %v1607, %v1615
    %v1618 = vtanh.pop %v1617
    %1620 = vrot.lane.b32.xlu0 %v1618, 64
    %v1621 = vpop.permute.xlu0 %1620
    %v1623 = vmul.f32 %v1606, %v1621
    %v1624 = vrot.slane %v1518, 4
    %1625 = vrot.lane.b32.xlu0 %v1624, 32
    %v1626 = vpop.permute.xlu0 %1625
    %v1627 = vsel %vm185, %v1626, 0
    %1629 = vmatprep.subr.mxu0 0.0
    %1630 = vmatpush1.msra.mxu0 %v172
    %1631 = vmatprep.subr.mxu0 0.0
    %1632 = vmatpush1.msra.mxu0 %v173
    %1633 = vmatprep.subr.mxu0 0.0
    %1634 = vmatpush1.msra.mxu0 %v174
    %1635 = vmatprep.subr.mxu0 0.0
    %1636 = vmatpush1.msra.mxu0 %v175
    %1637 = vmatprep.subr.mxu0 0.0
    %1638 = vmatpush1.msra.mxu0 0.0
    %1639 = vmatprep.subr.mxu0 0.0
    %1640 = vmatpush1.msra.mxu0 0.0
    %1641 = vmatprep.subr.mxu0 0.0
    %1642 = vmatpush1.msra.mxu0 0.0
    %1643 = vmatprep.subr.mxu0 0.0
    %1644 = vmatpush1.msra.mxu0 0.0
    %1645 = vmatprep.subr.mxu0 0.0
    %1646 = vmatpush1.msra.mxu0 0.0
    %1647 = vmatprep.subr.mxu0 0.0
    %1648 = vmatpush1.msra.mxu0 0.0
    %1649 = vmatprep.subr.mxu0 0.0
    %1650 = vmatpush1.msra.mxu0 0.0
    %1651 = vmatprep.subr.mxu0 0.0
    %1652 = vmatpush1.msra.mxu0 0.0
    %1653 = vmatprep.subr.mxu0 0.0
    %1654 = vmatpush1.msra.mxu0 0.0
    %1655 = vmatprep.subr.mxu0 0.0
    %1656 = vmatpush1.msra.mxu0 0.0
    %1657 = vmatprep.subr.mxu0 0.0
    %1658 = vmatpush1.msra.mxu0 0.0
    %1659 = vmatprep.subr.mxu0 0.0
    %1660 = vmatpush1.msra.mxu0 0.0
    %1661 = vmatprep.subr.mxu0 0.0
    %1662 = vmatpush1.msra.mxu0 0.0
    %1663 = vmatprep.subr.mxu0 0.0
    %1664 = vmatpush1.msra.mxu0 0.0
    %1665 = vmatprep.subr.mxu0 0.0
    %1666 = vmatpush1.msra.mxu0 0.0
    %1667 = vmatprep.subr.mxu0 0.0
    %1668 = vmatpush1.msra.mxu0 0.0
    %1669 = vmatprep.subr.mxu0 0.0
    %1670 = vmatpush1.msra.mxu0 0.0
    %1671 = vmatprep.subr.mxu0 0.0
    %1672 = vmatpush1.msra.mxu0 0.0
    %1673 = vmatprep.subr.mxu0 0.0
    %1674 = vmatpush1.msra.mxu0 0.0
    %1675 = vmatprep.subr.mxu0 0.0
    %1676 = vmatpush1.msra.mxu0 0.0
    %1677 = vmatprep.subr.mxu0 0.0
    %1678 = vmatpush1.msra.mxu0 0.0
    %1679 = vmatprep.subr.mxu0 0.0
    %1680 = vmatpush1.msra.mxu0 0.0
    %1681 = vmatprep.subr.mxu0 0.0
    %1682 = vmatpush1.msra.mxu0 0.0
    %1683 = vmatprep.subr.mxu0 0.0
    %1684 = vmatpush1.msra.mxu0 0.0
    %1685 = vmatprep.subr.mxu0 0.0
    %1686 = vmatpush1.msra.mxu0 0.0
    %1687 = vmatprep.subr.mxu0 0.0
    %1688 = vmatpush1.msra.mxu0 0.0
    %1689 = vmatprep.subr.mxu0 0.0
    %1690 = vmatpush1.msra.mxu0 0.0
    %1691 = vmatprep.subr.mxu0 0.0
    %1692 = vmatpush1.msra.mxu0 0.0
    %1693 = vmatprep.mubr.f32.mxu0 0.0
    %1694 = vmatmul.mubr.f32.gmra.mrb[0].mxu0 %v1627
    %v1695 = vpop.f32.mrb[0].mxu0
    %v1696 = vadd.f32 0.0, %v1695
    %v1697 = vpop.f32.mrb[0].mxu0
    %1698 = vdwg.mxu0
    %v1700 = vrot.slane %v1696, 2
    %v1702 = vadd.f32 %v169, %v1700
    %v1703 = vmul.f32 %v1702, %v77
    %v1704 = vtanh.pop %v1703
    %v1705 = vmul.f32 %v1704, %v77
    %v1706 = vadd.f32 %v1705, %v78
    %v1708 = vrot.slane %v1512, 6
    %v1710 = vmul.f32 %v1706, %v1708
    %1712 = vrot.lane.b32.xlu0 %v1706, 64
    %v1713 = vpop.permute.xlu0 %1712
    %v1715 = vmul.f32 %v1706, %v1713
    %1717 = vrot.lane.b32.xlu0 %v1715, 32
    %v1718 = vpop.permute.xlu0 %1717
    %v1720 = vadd.f32 %v1710, %v1718
    %v1721 = vtanh.pop %v1720
    %1723 = vrot.lane.b32.xlu0 %v1721, 64
    %v1724 = vpop.permute.xlu0 %1723
    %v1726 = vmul.f32 %v1706, %v1724
    %1728 = vrot.lane.b32.xlu0 %v1726, 32
    %v1729 = vpop.permute.xlu0 %1728
    %v1732 = vrot.slane %v1623, 2
    %1733 = vrot.lane.b32.xlu0 %v1732, 64
    %v1734 = vpop.permute.xlu0 %1733
    %v1736 = vsel %vm185, %v1729, %v1734
    %v1738 = vrot.slane %v1736, 6
    %v1739 = vsel %vm292, %v1738, 0
    %1741 = vmatprep.subr.mxu0 0.0
    %1742 = vmatpush1.msra.mxu0 %v176
    %1743 = vmatprep.subr.mxu0 0.0
    %1744 = vmatpush1.msra.mxu0 %v177
    %1745 = vmatprep.subr.mxu0 0.0
    %1746 = vmatpush1.msra.mxu0 %v178
    %1747 = vmatprep.subr.mxu0 0.0
    %1748 = vmatpush1.msra.mxu0 %v179
    %1749 = vmatprep.subr.mxu0 0.0
    %1750 = vmatpush1.msra.mxu0 %v180
    %1751 = vmatprep.subr.mxu0 0.0
    %1752 = vmatpush1.msra.mxu0 %v181
    %1753 = vmatprep.subr.mxu0 0.0
    %1754 = vmatpush1.msra.mxu0 %v182
    %1755 = vmatprep.subr.mxu0 0.0
    %1756 = vmatpush1.msra.mxu0 %v183
    %1757 = vmatprep.subr.mxu0 0.0
    %1758 = vmatpush1.msra.mxu0 0.0
    %1759 = vmatprep.subr.mxu0 0.0
    %1760 = vmatpush1.msra.mxu0 0.0
    %1761 = vmatprep.subr.mxu0 0.0
    %1762 = vmatpush1.msra.mxu0 0.0
    %1763 = vmatprep.subr.mxu0 0.0
    %1764 = vmatpush1.msra.mxu0 0.0
    %1765 = vmatprep.subr.mxu0 0.0
    %1766 = vmatpush1.msra.mxu0 0.0
    %1767 = vmatprep.subr.mxu0 0.0
    %1768 = vmatpush1.msra.mxu0 0.0
    %1769 = vmatprep.subr.mxu0 0.0
    %1770 = vmatpush1.msra.mxu0 0.0
    %1771 = vmatprep.subr.mxu0 0.0
    %1772 = vmatpush1.msra.mxu0 0.0
    %1773 = vmatprep.subr.mxu0 0.0
    %1774 = vmatpush1.msra.mxu0 0.0
    %1775 = vmatprep.subr.mxu0 0.0
    %1776 = vmatpush1.msra.mxu0 0.0
    %1777 = vmatprep.subr.mxu0 0.0
    %1778 = vmatpush1.msra.mxu0 0.0
    %1779 = vmatprep.subr.mxu0 0.0
    %1780 = vmatpush1.msra.mxu0 0.0
    %1781 = vmatprep.subr.mxu0 0.0
    %1782 = vmatpush1.msra.mxu0 0.0
    %1783 = vmatprep.subr.mxu0 0.0
    %1784 = vmatpush1.msra.mxu0 0.0
    %1785 = vmatprep.subr.mxu0 0.0
    %1786 = vmatpush1.msra.mxu0 0.0
    %1787 = vmatprep.subr.mxu0 0.0
    %1788 = vmatpush1.msra.mxu0 0.0
    %1789 = vmatprep.subr.mxu0 0.0
    %1790 = vmatpush1.msra.mxu0 0.0
    %1791 = vmatprep.subr.mxu0 0.0
    %1792 = vmatpush1.msra.mxu0 0.0
    %1793 = vmatprep.subr.mxu0 0.0
    %1794 = vmatpush1.msra.mxu0 0.0
    %1795 = vmatprep.subr.mxu0 0.0
    %1796 = vmatpush1.msra.mxu0 0.0
    %1797 = vmatprep.subr.mxu0 0.0
    %1798 = vmatpush1.msra.mxu0 0.0
    %1799 = vmatprep.subr.mxu0 0.0
    %1800 = vmatpush1.msra.mxu0 0.0
    %1801 = vmatprep.subr.mxu0 0.0
    %1802 = vmatpush1.msra.mxu0 0.0
    %1803 = vmatprep.subr.mxu0 0.0
    %1804 = vmatpush1.msra.mxu0 0.0
    %1805 = vmatprep.mubr.f32.mxu0 0.0
    %1806 = vmatmul.mubr.f32.gmra.mrb[0].mxu0 %v1739
    %v1807 = vpop.f32.mrb[0].mxu0
    %v1808 = vadd.f32 %v290, %v1807
    %v1809 = vpop.f32.mrb[0].mxu0
    %1810 = vdwg.mxu0
    %v1811 = vmul.f32 %v1808, %v77
    %v1812 = vtanh.pop %v1811
    %v1813 = vmul.f32 %v1812, %v77
    %v1814 = vadd.f32 %v1813, %v78
    %v1815 = vmul.f32 %v1814, %v1617
    %1817 = vrot.lane.b32.xlu0 %v1814, 64
    %v1818 = vpop.permute.xlu0 %1817
    %v1820 = vmul.f32 %v1814, %v1818
    %1822 = vrot.lane.b32.xlu0 %v1820, 32
    %v1823 = vpop.permute.xlu0 %1822
    %v1825 = vadd.f32 %v1815, %v1823
    %v1826 = vtanh.pop %v1825
    %1828 = vrot.lane.b32.xlu0 %v1826, 64
    %v1829 = vpop.permute.xlu0 %1828
    %v1831 = vmul.f32 %v1814, %v1829
    %v1832 = vrot.slane %v591, 6
    %v1834 = vrot.slane %v799, 4
    %v1836 = vrot.slane %v1007, 2
    %v1838 = vrot.slane %v1415, 6
    %v1840 = vrot.slane %v1623, 4
    %v1843 = vrot.slane %v1831, 2
    %vm1845 = vcmask 1041408
    %v1846 = vsel %vm1845, %v386, %v1832
    %vm1847 = vcmask 1043456
    %v1848 = vsel %vm1847, %v1846, %v1834
    %vm1849 = vcmask 1045504
    %v1850 = vsel %vm1849, %v1848, %v1836
    %v1851 = vsel %vm1845, %v1210, %v1838
    %v1852 = vsel %vm1847, %v1851, %v1840
    %v1853 = vsel %vm1849, %v1852, %v1843
    %v1854 = vld [vmem:[%s6] sm:$0x1]
    %v1856 = vlaneseq
    %v1857 = vshrl.u32 %v1856, 7
    %v1858 = vsub.s32 0, %v1857
    %v1859 = vrot.slane %v1854, %v1858
    %1860 = vrot.lane.b32.xlu0 %v1859, 96
    %v1861 = vpop.permute.xlu0 %1860
    %v1863 = vmul.f32 %v1850, %v1861
    %v1864 = vmul.f32 %v1853, %v1861
    %1867 = vrot.lane.b32.xlu0 %v1863, 32
    %v1868 = vpop.permute.xlu0 %1867
    %1869 = vrot.lane.b32.xlu0 %v1864, 32
    %v1870 = vpop.permute.xlu0 %1869
    %v1873 = vsel %vm185, %v1868, 0.0
    %1874 = vadd.xlane.f32.xlu0 %v1873
    %v1875 = vpop.xlane.xlu0 %1874
    %v1876 = vsel %vm185, %v1870, 0.0
    %1877 = vadd.xlane.f32.xlu0 %v1876
    %v1878 = vpop.xlane.xlu0 %1877
    %v1879 = vld [vmem:[#allocation2] sm:$0x1]
    %v1881 = vlaneseq
    %v1882 = vshrl.u32 %v1881, 7
    %v1883 = vsub.s32 0, %v1882
    %v1884 = vrot.slane %v1879, %v1883
    %v1886 = vadd.f32 %v1875, %v1884
    %v1887 = vadd.f32 %v1878, %v1884
    %vm1888 = vcmask 7168
    %1889 = vst.msk [vmem:[%s8] sm:$0xff] %vm1888, %v1886
    %1890 = vst.msk [vmem:[%s8 + $0x8] sm:$0xff] %vm1888, %v1887
    // Predicated region
    $region46: #{lstm_model_forward.1} parent=1 // pred_check
      _
    $region47: #{lstm_model_forward.1} parent=1 // pred_check_branch
      %1892 = sbr.rel (0) target = $region49
    $region48: #{lstm_model_forward.1} parent=1 // pred_region
      _
    $region49: #{lstm_model_forward.1} parent=1 // pred_fallthru
      _
    // Predicated region
    $region50: #{lstm_model_forward.1} parent=1 // pred_check
      _
    $region51: #{lstm_model_forward.1} parent=1 // pred_check_branch
      %1894 = sbr.rel (0) target = $region53
    $region52: #{lstm_model_forward.1} parent=1 // pred_region
      _
    $region53: #{lstm_model_forward.1} parent=1 // pred_fallthru
      _
    %1895 = vsyncpa [#allocation4], 1
    %1896 = vsyncpa [#allocation6], 1

</llo_original>
